<compile_context>
chip_gen: v7x
topology: tpu7x:2x2x1
jax: 0.10.0
libtpu: 0.0.40
codegen_flags: <defaults>
</compile_context>

<pallas_src>
import functools

import jax
import jax.numpy as jnp
from jax.experimental import pallas as pl
from jax.experimental.pallas import tpu as pltpu

EPS = 1e-5
EXPANSION = 16


# -----------------------------------------------------------------------------
# Kernel
# -----------------------------------------------------------------------------
def bottleneck_kernel(x_ref, w1_ref, w2_ref, w3_ref, w4_ref, w5_ref,
                      sh_ref, b_ref, o_ref, *, Nb, H, W, cin, width):
    R = Nb * H                 # matmul M dimension (rows = (image, y))
    Lw = W * width             # lane width of the narrow (width-channel) tensors
    Lc = W * cin               # lane width of the wide (cin-channel) tensors

    x = x_ref[...].reshape(R, Lc)            # f32 activations, lane-dense
    s_m1 = sh_ref[0]                         # (R,R) bf16: (s_m1 @ a)[r] == a[r-1]
    s_p1 = sh_ref[1]                         # (R,R) bf16: (s_p1 @ a)[r] == a[r+1]

    def mm(a, b):              # bf16 x bf16 -> f32 accumulate on the MXU
        return jnp.dot(a.astype(jnp.bfloat16), b.astype(jnp.bfloat16),
                       preferred_element_type=jnp.float32)

    def conv3x3(a, w_ref):
        # w_ref holds (3, K, Co) block-banded tap matrices for dy = -1, 0, +1.
        a_m1 = mm(s_m1, a)     # row r <- a[r-1]  (zero row at y == 0)
        a_p1 = mm(s_p1, a)     # row r <- a[r+1]  (zero row at y == H-1)
        return mm(a_m1, w_ref[0]) + mm(a, w_ref[1]) + mm(a_p1, w_ref[2])

    b1 = b_ref[0:1, :Lw]
    b2 = b_ref[1:2, :Lw]
    b3 = b_ref[2:3, :Lc]       # already scaled by the ADF 0.5
    b4 = b_ref[3:4, :Lw]
    b5 = b_ref[4:5, :Lc]

    h = jnp.maximum(mm(x, w1_ref[...]) + b1, 0.0)        # conv1 + bn1 + relu
    h = jnp.maximum(conv3x3(h, w2_ref) + b2, 0.0)        # conv2 + bn2 + relu
    h = mm(h, w3_ref[...]) + b3                          # 0.5 * (conv3 + bn3)
    h = jnp.maximum(h + 0.5 * x, 0.0)                    # ADF fuse + relu
    h = jnp.maximum(conv3x3(h, w4_ref) + b4, 0.0)        # conv4 + bn4 + relu
    h = jnp.maximum(mm(h, w5_ref[...]) + b5, 0.0)        # conv5 + bn5 + relu

    o_ref[...] = h.reshape(Nb, H, Lc)


# -----------------------------------------------------------------------------
# Host-side weight preparation (BN folding, kron re-layout, shift matrices)
# -----------------------------------------------------------------------------
def prepare_params(p, H, W, Nb):
    width = p["w1"].shape[0]
    cin = p["w1"].shape[1]
    cmid = p["w3"].shape[0]
    assert cmid == cin, "ADF fuse requires planes * expansion == inplanes"
    f32 = jnp.float32
    eye_w = jnp.eye(W, dtype=f32)
    Lc = W * cin

    def fold1x1(w, s):                       # w: (co, ci, 1, 1), s: (co,)
        wf = (w[:, :, 0, 0] * s[:, None]).T                       # (ci, co)
        return jnp.kron(eye_w, wf).astype(jnp.bfloat16)           # (W*ci, W*co)

    def fold3x3(w, s):                       # w: (co, ci, 3, 3), s: (co,)
        co, ci = w.shape[0], w.shape[1]
        ws = w * s[:, None, None, None]
        mats = []
        for dy in (-1, 0, 1):
            m = jnp.zeros((W * ci, W * co), f32)
            for dx in (-1, 0, 1):
                tap = ws[:, :, dy + 1, dx + 1].T                  # (ci, co)
                # block (x_in, x_out) present iff x_in == x_out + dx
                m = m + jnp.kron(jnp.eye(W, k=-dx, dtype=f32), tap)
            mats.append(m)
        return jnp.stack(mats).astype(jnp.bfloat16)               # (3, W*ci, W*co)

    def lane_bias(b):                        # (c,) -> (W*c,), x-major / ch-minor
        return jnp.tile(b, W)

    bias = jnp.zeros((8, Lc), f32)
    bias = bias.at[0, :W * width].set(lane_bias(p["b1"]))
    bias = bias.at[1, :W * width].set(lane_bias(p["b2"]))
    bias = bias.at[2, :].set(lane_bias(p["b3"]) * 0.5)            # ADF 0.5 folded
    bias = bias.at[3, :W * width].set(lane_bias(p["b4"]))
    bias = bias.at[4, :].set(lane_bias(p["b5"]))

    # Row-shift matrices over R = Nb*H rows; block-diag over images gives the
    # image boundaries, the off-diagonal eye gives the y zero-padding.
    shift_m1 = jnp.kron(jnp.eye(Nb, dtype=f32), jnp.eye(H, k=-1, dtype=f32))
    shift_p1 = jnp.kron(jnp.eye(Nb, dtype=f32), jnp.eye(H, k=1, dtype=f32))
    shifts = jnp.stack([shift_m1, shift_p1]).astype(jnp.bfloat16)  # (2, R, R)

    return {
        "Nb": Nb, "width": width, "cin": cin,
        "w1": fold1x1(p["w1"], p["s1"]),
        "w2": fold3x3(p["w2"], p["s2"]),
        "w3": fold1x1(p["w3"], p["s3"] * 0.5),                    # ADF 0.5 folded
        "w4": fold3x3(p["w4"], p["s4"]),
        "w5": fold1x1(p["w5"], p["s5"]),
        "sh": shifts,
        "bias": bias,
    }


# -----------------------------------------------------------------------------
# Wrapper
# -----------------------------------------------------------------------------
def bottleneck_forward(x_nchw, p):
    """Pallas implementation.  x_nchw: (N, inplanes, H, W) -> same shape."""
    N, C, H, W = x_nchw.shape
    # Two-way parallel grid when possible (keeps both v7x TensorCores busy);
    # batch is folded into the matmul M dimension inside each block.
    Nb = N // 2 if (N % 2 == 0 and N >= 2) else N
    prep = prepare_params(p, H, W, Nb)
    assert C == prep["cin"]
    Lc = W * C

    # Single layout transform NCHW -> (N, H, W*C); a real model would keep
    # activations NHWC end-to-end and skip this.
    x_l = jnp.transpose(x_nchw.astype(jnp.float32), (0, 2, 3, 1)).reshape(N, H, Lc)

    args = (x_l, prep["w1"], prep["w2"], prep["w3"], prep["w4"], prep["w5"],
            prep["sh"], prep["bias"])

    def full_spec(a):
        nd = a.ndim
        return pl.BlockSpec(a.shape, lambda i, _nd=nd: (0,) * _nd)

    in_specs = [pl.BlockSpec((Nb, H, Lc), lambda i: (i, 0, 0))]
    in_specs += [full_spec(a) for a in args[1:]]

    kern = functools.partial(bottleneck_kernel, Nb=Nb, H=H, W=W,
                             cin=C, width=prep["width"])

    out_l = pl.pallas_call(
        kern,
        out_shape=jax.ShapeDtypeStruct((N, H, Lc), jnp.float32),
        grid_spec=pltpu.PrefetchScalarGridSpec(
            num_scalar_prefetch=0,
            grid=(N // Nb,),
            in_specs=in_specs,
            out_specs=pl.BlockSpec((Nb, H, Lc), lambda i: (i, 0, 0)),
        ),
        compiler_params=pltpu.CompilerParams(
            dimension_semantics=("parallel",)),
    )(*args)

    return jnp.transpose(out_l.reshape(N, H, W, C), (0, 3, 1, 2))   # back to NCHW


# -----------------------------------------------------------------------------
# Deterministic parameters matching Bottleneck.__init__ shapes / init
# -----------------------------------------------------------------------------
def make_params(key, inplanes, planes, base_width=64, groups=1):
    width = int(planes * (base_width / 64.0)) * groups
    cmid = planes * EXPANSION
    ks = jax.random.split(key, 5)

    def kaiming(k, co, ci, kh, kw):  # kaiming_normal_(mode='fan_out', relu)
        fan_out = co * kh * kw
        std = (2.0 / fan_out) ** 0.5
        return std * jax.random.normal(k, (co, ci, kh, kw), jnp.float32)

    def bn(c):  # eval-mode BN: gamma=1, beta=0, mean=0, var=1
        scale = jnp.full((c,), (1.0 + EPS) ** -0.5, jnp.float32)
        bias = jnp.zeros((c,), jnp.float32)
        return scale, bias

    p = {
        "w1": kaiming(ks[0], width, inplanes, 1, 1),
        "w2": kaiming(ks[1], width, width, 3, 3),
        "w3": kaiming(ks[2], cmid, width, 1, 1),
        "w4": kaiming(ks[3], width, cmid, 3, 3),
        "w5": kaiming(ks[4], inplanes, width, 1, 1),
    }
    (p["s1"], p["b1"]) = bn(width)
    (p["s2"], p["b2"]) = bn(width)
    (p["s3"], p["b3"]) = bn(cmid)
    (p["s4"], p["b4"]) = bn(width)
    (p["s5"], p["b5"]) = bn(inplanes)
    return p


# -----------------------------------------------------------------------------
# Pure-JAX reference (standard conv formulation) for verification
# -----------------------------------------------------------------------------
def reference_forward(x_nchw, p):
    """Reference of Bottleneck.forward (fuse_type='ADF', eval-mode BN).

    Eval-mode BN is an exact per-channel affine transform, so it is folded
    into the conv weights (the same exact folding the kernel uses), and
    matmul operands are cast to bf16 with f32 accumulation to match the
    kernel's MXU precision, so the comparison isolates structural errors.
    """
    x = jnp.transpose(x_nchw.astype(jnp.float32), (0, 2, 3, 1))      # NHWC
    H, W = x.shape[1], x.shape[2]

    def fold(w, s):
        return (w * s.reshape(-1, 1, 1, 1)).astype(jnp.bfloat16)

    def c1x1(h, w):                                    # w: (co, ci, 1, 1)
        return jnp.einsum("nhwc,oc->nhwo", h.astype(jnp.bfloat16),
                          w[:, :, 0, 0], preferred_element_type=jnp.float32)

    def c3x3(h, w):                                    # w: (co, ci, 3, 3)
        hp = jnp.pad(h, ((0, 0), (1, 1), (1, 1), (0, 0)))
        out = 0.0
        for ky in range(3):
            for kx in range(3):
                out = out + jnp.einsum(
                    "nhwc,oc->nhwo",
                    hp[:, ky:ky + H, kx:kx + W, :].astype(jnp.bfloat16),
                    w[:, :, ky, kx], preferred_element_type=jnp.float32)
        return out

    def bias(b):
        return b.reshape(1, 1, 1, -1)

    relu = lambda t: jnp.maximum(t, 0.0)
    res = x
    h = relu(c1x1(x, fold(p["w1"], p["s1"])) + bias(p["b1"]))
    h = relu(c3x3(h, fold(p["w2"], p["s2"])) + bias(p["b2"]))
    h = c1x1(h, fold(p["w3"], p["s3"])) + bias(p["b3"])
    h = relu((h + res) * 0.5)                           # ADF fuse + relu
    h = relu(c3x3(h, fold(p["w4"], p["s4"])) + bias(p["b4"]))
    h = relu(c1x1(h, fold(p["w5"], p["s5"])) + bias(p["b5"]))
    return jnp.transpose(h, (0, 3, 1, 2))


if __name__ == "__main__":
    key = jax.random.PRNGKey(0)
    N, H, W = 8, 8, 8
    planes = 4
    inplanes = planes * EXPANSION        # 64; required by the ADF fuse path

    kx, kp = jax.random.split(key)
    x_nchw = jax.random.normal(kx, (N, inplanes, H, W), jnp.float32)
    params = make_params(kp, inplanes, planes)

    out = bottleneck_forward(x_nchw, params)
    out = jax.block_until_ready(out)

    ref = reference_forward(x_nchw, params)
    err = float(jnp.max(jnp.abs(out - ref)))
    scale = float(jnp.max(jnp.abs(ref))) + 1e-6
    assert err / scale < 1e-3, f"kernel mismatch: max_abs_err={err}, scale={scale}"
    print("KERNEL_OK")
</pallas_src>

<mosaic_0001>
module attributes {stable_mosaic.version = 11 : i64} {
  func.func @bottleneck_kernel(%arg0: i32, %arg1: memref<4x8x512xf32, #tpu.memory_space<vmem>>, %arg2: memref<512x32xbf16, #tpu.memory_space<vmem>>, %arg3: memref<3x32x32xbf16, #tpu.memory_space<vmem>>, %arg4: memref<32x512xbf16, #tpu.memory_space<vmem>>, %arg5: memref<3x512x32xbf16, #tpu.memory_space<vmem>>, %arg6: memref<32x512xbf16, #tpu.memory_space<vmem>>, %arg7: memref<2x32x32xbf16, #tpu.memory_space<vmem>>, %arg8: memref<8x512xf32, #tpu.memory_space<vmem>>, %arg9: memref<4x8x512xf32, #tpu.memory_space<vmem>>) attributes {dimension_semantics = [#tpu.dimension_semantics<parallel>], iteration_bounds = array<i64: 2>, scalar_prefetch = 0 : i64, scratch_operands = 0 : i64, tpu.core_type = #tpu.core_type<tc>, window_params = [{transform_indices = @transform_0, window_bounds = array<i64: 4, 8, 512>}, {pipeline_mode = #tpu.pipeline_mode<synchronous>, transform_indices = @transform_1, window_bounds = array<i64: 512, 32>}, {pipeline_mode = #tpu.pipeline_mode<synchronous>, transform_indices = @transform_2, window_bounds = array<i64: 3, 32, 32>}, {pipeline_mode = #tpu.pipeline_mode<synchronous>, transform_indices = @transform_3, window_bounds = array<i64: 32, 512>}, {pipeline_mode = #tpu.pipeline_mode<synchronous>, transform_indices = @transform_4, window_bounds = array<i64: 3, 512, 32>}, {pipeline_mode = #tpu.pipeline_mode<synchronous>, transform_indices = @transform_5, window_bounds = array<i64: 32, 512>}, {pipeline_mode = #tpu.pipeline_mode<synchronous>, transform_indices = @transform_6, window_bounds = array<i64: 2, 32, 32>}, {pipeline_mode = #tpu.pipeline_mode<synchronous>, transform_indices = @transform_7, window_bounds = array<i64: 8, 512>}, {transform_indices = @transform_8, window_bounds = array<i64: 4, 8, 512>}]} {
    %c0 = arith.constant 0 : index
    %c0_0 = arith.constant 0 : index
    %c0_1 = arith.constant 0 : index
    %0 = vector.load %arg1[%c0, %c0_0, %c0_1] : memref<4x8x512xf32, #tpu.memory_space<vmem>>, vector<4x8x512xf32>
    %1 = vector.shape_cast %0 : vector<4x8x512xf32> to vector<32x512xf32>
    %c0_2 = arith.constant 0 : index
    %c0_3 = arith.constant 0 : index
    %c0_4 = arith.constant 0 : index
    %2 = vector.load %arg7[%c0_2, %c0_3, %c0_4] : memref<2x32x32xbf16, #tpu.memory_space<vmem>>, vector<1x32x32xbf16>
    %3 = vector.shape_cast %2 : vector<1x32x32xbf16> to vector<32x32xbf16>
    %c1 = arith.constant 1 : index
    %c0_5 = arith.constant 0 : index
    %c0_6 = arith.constant 0 : index
    %4 = vector.load %arg7[%c1, %c0_5, %c0_6] : memref<2x32x32xbf16, #tpu.memory_space<vmem>>, vector<1x32x32xbf16>
    %5 = vector.shape_cast %4 : vector<1x32x32xbf16> to vector<32x32xbf16>
    %c0_7 = arith.constant 0 : index
    %c0_8 = arith.constant 0 : index
    %6 = vector.load %arg8[%c0_7, %c0_8] : memref<8x512xf32, #tpu.memory_space<vmem>>, vector<1x32xf32>
    %c1_9 = arith.constant 1 : index
    %c0_10 = arith.constant 0 : index
    %7 = vector.load %arg8[%c1_9, %c0_10] : memref<8x512xf32, #tpu.memory_space<vmem>>, vector<1x32xf32>
    %c2 = arith.constant 2 : index
    %c0_11 = arith.constant 0 : index
    %8 = vector.load %arg8[%c2, %c0_11] : memref<8x512xf32, #tpu.memory_space<vmem>>, vector<1x512xf32>
    %c3 = arith.constant 3 : index
    %c0_12 = arith.constant 0 : index
    %9 = vector.load %arg8[%c3, %c0_12] : memref<8x512xf32, #tpu.memory_space<vmem>>, vector<1x32xf32>
    %c4 = arith.constant 4 : index
    %c0_13 = arith.constant 0 : index
    %10 = vector.load %arg8[%c4, %c0_13] : memref<8x512xf32, #tpu.memory_space<vmem>>, vector<1x512xf32>
    %c0_14 = arith.constant 0 : index
    %c0_15 = arith.constant 0 : index
    %11 = vector.load %arg2[%c0_14, %c0_15] : memref<512x32xbf16, #tpu.memory_space<vmem>>, vector<512x32xbf16>
    %12 = arith.truncf %1 : vector<32x512xf32> to vector<32x512xbf16>
    %cst = arith.constant dense<0.000000e+00> : vector<32x32xf32>
    %13 = tpu.matmul %12, %11, %cst {dimension_numbers = #tpu.dot_dimension_numbers<[1], [0], [0], [1], [0, 0, 1, 1], [], []>} : vector<32x512xbf16>, vector<512x32xbf16>, vector<32x32xf32> -> vector<32x32xf32>
    %14 = vector.broadcast %6 : vector<1x32xf32> to vector<32x32xf32>
    %15 = arith.addf %13, %14 : vector<32x32xf32>
    %cst_16 = arith.constant 0.000000e+00 : f32
    %16 = vector.broadcast %cst_16 : f32 to vector<32x32xf32>
    %17 = arith.maximumf %15, %16 : vector<32x32xf32>
    %18 = arith.truncf %17 : vector<32x32xf32> to vector<32x32xbf16>
    %cst_17 = arith.constant dense<0.000000e+00> : vector<32x32xf32>
    %19 = tpu.matmul %3, %18, %cst_17 {dimension_numbers = #tpu.dot_dimension_numbers<[1], [0], [0], [1], [0, 0, 1, 1], [], []>} : vector<32x32xbf16>, vector<32x32xbf16>, vector<32x32xf32> -> vector<32x32xf32>
    %20 = arith.truncf %17 : vector<32x32xf32> to vector<32x32xbf16>
    %cst_18 = arith.constant dense<0.000000e+00> : vector<32x32xf32>
    %21 = tpu.matmul %5, %20, %cst_18 {dimension_numbers = #tpu.dot_dimension_numbers<[1], [0], [0], [1], [0, 0, 1, 1], [], []>} : vector<32x32xbf16>, vector<32x32xbf16>, vector<32x32xf32> -> vector<32x32xf32>
    %c0_19 = arith.constant 0 : index
    %c0_20 = arith.constant 0 : index
    %c0_21 = arith.constant 0 : index
    %22 = vector.load %arg3[%c0_19, %c0_20, %c0_21] : memref<3x32x32xbf16, #tpu.memory_space<vmem>>, vector<1x32x32xbf16>
    %23 = vector.shape_cast %22 : vector<1x32x32xbf16> to vector<32x32xbf16>
    %24 = arith.truncf %19 : vector<32x32xf32> to vector<32x32xbf16>
    %cst_22 = arith.constant dense<0.000000e+00> : vector<32x32xf32>
    %25 = tpu.matmul %24, %23, %cst_22 {dimension_numbers = #tpu.dot_dimension_numbers<[1], [0], [0], [1], [0, 0, 1, 1], [], []>} : vector<32x32xbf16>, vector<32x32xbf16>, vector<32x32xf32> -> vector<32x32xf32>
    %c1_23 = arith.constant 1 : index
    %c0_24 = arith.constant 0 : index
    %c0_25 = arith.constant 0 : index
    %26 = vector.load %arg3[%c1_23, %c0_24, %c0_25] : memref<3x32x32xbf16, #tpu.memory_space<vmem>>, vector<1x32x32xbf16>
    %27 = vector.shape_cast %26 : vector<1x32x32xbf16> to vector<32x32xbf16>
    %28 = arith.truncf %17 : vector<32x32xf32> to vector<32x32xbf16>
    %cst_26 = arith.constant dense<0.000000e+00> : vector<32x32xf32>
    %29 = tpu.matmul %28, %27, %cst_26 {dimension_numbers = #tpu.dot_dimension_numbers<[1], [0], [0], [1], [0, 0, 1, 1], [], []>} : vector<32x32xbf16>, vector<32x32xbf16>, vector<32x32xf32> -> vector<32x32xf32>
    %30 = arith.addf %25, %29 : vector<32x32xf32>
    %c2_27 = arith.constant 2 : index
    %c0_28 = arith.constant 0 : index
    %c0_29 = arith.constant 0 : index
    %31 = vector.load %arg3[%c2_27, %c0_28, %c0_29] : memref<3x32x32xbf16, #tpu.memory_space<vmem>>, vector<1x32x32xbf16>
    %32 = vector.shape_cast %31 : vector<1x32x32xbf16> to vector<32x32xbf16>
    %33 = arith.truncf %21 : vector<32x32xf32> to vector<32x32xbf16>
    %cst_30 = arith.constant dense<0.000000e+00> : vector<32x32xf32>
    %34 = tpu.matmul %33, %32, %cst_30 {dimension_numbers = #tpu.dot_dimension_numbers<[1], [0], [0], [1], [0, 0, 1, 1], [], []>} : vector<32x32xbf16>, vector<32x32xbf16>, vector<32x32xf32> -> vector<32x32xf32>
    %35 = arith.addf %30, %34 : vector<32x32xf32>
    %36 = vector.broadcast %7 : vector<1x32xf32> to vector<32x32xf32>
    %37 = arith.addf %35, %36 : vector<32x32xf32>
    %cst_31 = arith.constant 0.000000e+00 : f32
    %38 = vector.broadcast %cst_31 : f32 to vector<32x32xf32>
    %39 = arith.maximumf %37, %38 : vector<32x32xf32>
    %c0_32 = arith.constant 0 : index
    %c0_33 = arith.constant 0 : index
    %40 = vector.load %arg4[%c0_32, %c0_33] : memref<32x512xbf16, #tpu.memory_space<vmem>>, vector<32x512xbf16>
    %41 = arith.truncf %39 : vector<32x32xf32> to vector<32x32xbf16>
    %cst_34 = arith.constant dense<0.000000e+00> : vector<32x512xf32>
    %42 = tpu.matmul %41, %40, %cst_34 {dimension_numbers = #tpu.dot_dimension_numbers<[1], [0], [0], [1], [0, 0, 1, 1], [], []>} : vector<32x32xbf16>, vector<32x512xbf16>, vector<32x512xf32> -> vector<32x512xf32>
    %43 = vector.broadcast %8 : vector<1x512xf32> to vector<32x512xf32>
    %44 = arith.addf %42, %43 : vector<32x512xf32>
    %cst_35 = arith.constant 5.000000e-01 : f32
    %45 = vector.broadcast %cst_35 : f32 to vector<32x512xf32>
    %46 = arith.mulf %45, %1 : vector<32x512xf32>
    %47 = arith.addf %44, %46 : vector<32x512xf32>
    %cst_36 = arith.constant 0.000000e+00 : f32
    %48 = vector.broadcast %cst_36 : f32 to vector<32x512xf32>
    %49 = arith.maximumf %47, %48 : vector<32x512xf32>
    %50 = arith.truncf %49 : vector<32x512xf32> to vector<32x512xbf16>
    %cst_37 = arith.constant dense<0.000000e+00> : vector<32x512xf32>
    %51 = tpu.matmul %3, %50, %cst_37 {dimension_numbers = #tpu.dot_dimension_numbers<[1], [0], [0], [1], [0, 0, 1, 1], [], []>} : vector<32x32xbf16>, vector<32x512xbf16>, vector<32x512xf32> -> vector<32x512xf32>
    %52 = arith.truncf %49 : vector<32x512xf32> to vector<32x512xbf16>
    %cst_38 = arith.constant dense<0.000000e+00> : vector<32x512xf32>
    %53 = tpu.matmul %5, %52, %cst_38 {dimension_numbers = #tpu.dot_dimension_numbers<[1], [0], [0], [1], [0, 0, 1, 1], [], []>} : vector<32x32xbf16>, vector<32x512xbf16>, vector<32x512xf32> -> vector<32x512xf32>
    %c0_39 = arith.constant 0 : index
    %c0_40 = arith.constant 0 : index
    %c0_41 = arith.constant 0 : index
    %54 = vector.load %arg5[%c0_39, %c0_40, %c0_41] : memref<3x512x32xbf16, #tpu.memory_space<vmem>>, vector<1x512x32xbf16>
    %55 = vector.shape_cast %54 : vector<1x512x32xbf16> to vector<512x32xbf16>
    %56 = arith.truncf %51 : vector<32x512xf32> to vector<32x512xbf16>
    %cst_42 = arith.constant dense<0.000000e+00> : vector<32x32xf32>
    %57 = tpu.matmul %56, %55, %cst_42 {dimension_numbers = #tpu.dot_dimension_numbers<[1], [0], [0], [1], [0, 0, 1, 1], [], []>} : vector<32x512xbf16>, vector<512x32xbf16>, vector<32x32xf32> -> vector<32x32xf32>
    %c1_43 = arith.constant 1 : index
    %c0_44 = arith.constant 0 : index
    %c0_45 = arith.constant 0 : index
    %58 = vector.load %arg5[%c1_43, %c0_44, %c0_45] : memref<3x512x32xbf16, #tpu.memory_space<vmem>>, vector<1x512x32xbf16>
    %59 = vector.shape_cast %58 : vector<1x512x32xbf16> to vector<512x32xbf16>
    %60 = arith.truncf %49 : vector<32x512xf32> to vector<32x512xbf16>
    %cst_46 = arith.constant dense<0.000000e+00> : vector<32x32xf32>
    %61 = tpu.matmul %60, %59, %cst_46 {dimension_numbers = #tpu.dot_dimension_numbers<[1], [0], [0], [1], [0, 0, 1, 1], [], []>} : vector<32x512xbf16>, vector<512x32xbf16>, vector<32x32xf32> -> vector<32x32xf32>
    %62 = arith.addf %57, %61 : vector<32x32xf32>
    %c2_47 = arith.constant 2 : index
    %c0_48 = arith.constant 0 : index
    %c0_49 = arith.constant 0 : index
    %63 = vector.load %arg5[%c2_47, %c0_48, %c0_49] : memref<3x512x32xbf16, #tpu.memory_space<vmem>>, vector<1x512x32xbf16>
    %64 = vector.shape_cast %63 : vector<1x512x32xbf16> to vector<512x32xbf16>
    %65 = arith.truncf %53 : vector<32x512xf32> to vector<32x512xbf16>
    %cst_50 = arith.constant dense<0.000000e+00> : vector<32x32xf32>
    %66 = tpu.matmul %65, %64, %cst_50 {dimension_numbers = #tpu.dot_dimension_numbers<[1], [0], [0], [1], [0, 0, 1, 1], [], []>} : vector<32x512xbf16>, vector<512x32xbf16>, vector<32x32xf32> -> vector<32x32xf32>
    %67 = arith.addf %62, %66 : vector<32x32xf32>
    %68 = vector.broadcast %9 : vector<1x32xf32> to vector<32x32xf32>
    %69 = arith.addf %67, %68 : vector<32x32xf32>
    %cst_51 = arith.constant 0.000000e+00 : f32
    %70 = vector.broadcast %cst_51 : f32 to vector<32x32xf32>
    %71 = arith.maximumf %69, %70 : vector<32x32xf32>
    %c0_52 = arith.constant 0 : index
    %c0_53 = arith.constant 0 : index
    %72 = vector.load %arg6[%c0_52, %c0_53] : memref<32x512xbf16, #tpu.memory_space<vmem>>, vector<32x512xbf16>
    %73 = arith.truncf %71 : vector<32x32xf32> to vector<32x32xbf16>
    %cst_54 = arith.constant dense<0.000000e+00> : vector<32x512xf32>
    %74 = tpu.matmul %73, %72, %cst_54 {dimension_numbers = #tpu.dot_dimension_numbers<[1], [0], [0], [1], [0, 0, 1, 1], [], []>} : vector<32x32xbf16>, vector<32x512xbf16>, vector<32x512xf32> -> vector<32x512xf32>
    %75 = vector.broadcast %10 : vector<1x512xf32> to vector<32x512xf32>
    %76 = arith.addf %74, %75 : vector<32x512xf32>
    %cst_55 = arith.constant 0.000000e+00 : f32
    %77 = vector.broadcast %cst_55 : f32 to vector<32x512xf32>
    %78 = arith.maximumf %76, %77 : vector<32x512xf32>
    %79 = vector.shape_cast %78 : vector<32x512xf32> to vector<4x8x512xf32>
    %c0_56 = arith.constant 0 : index
    %c0_57 = arith.constant 0 : index
    %c0_58 = arith.constant 0 : index
    %80 = vector.load %arg9[%c0_56, %c0_57, %c0_58] : memref<4x8x512xf32, #tpu.memory_space<vmem>>, vector<4x8x512xf32>
    tpu.vector_store %arg9[%c0_56, %c0_57, %c0_58], %79 {strides = array<i32>} : memref<4x8x512xf32, #tpu.memory_space<vmem>>, vector<4x8x512xf32>,
    return
  }
  func.func @transform_0(%arg0: i32) -> (i32, i32, i32) {
    %c0_i32 = arith.constant 0 : i32
    %c0_i32_0 = arith.constant 0 : i32
    %c0_i32_1 = arith.constant 0 : i32
    return %arg0, %c0_i32, %c0_i32_0 : i32, i32, i32
  }
  func.func @transform_1(%arg0: i32) -> (i32, i32) {
    %c0_i32 = arith.constant 0 : i32
    %c0_i32_0 = arith.constant 0 : i32
    %c0_i32_1 = arith.constant 0 : i32
    return %c0_i32, %c0_i32_0 : i32, i32
  }
  func.func @transform_2(%arg0: i32) -> (i32, i32, i32) {
    %c0_i32 = arith.constant 0 : i32
    %c0_i32_0 = arith.constant 0 : i32
    %c0_i32_1 = arith.constant 0 : i32
    %c0_i32_2 = arith.constant 0 : i32
    return %c0_i32, %c0_i32_0, %c0_i32_1 : i32, i32, i32
  }
  func.func @transform_3(%arg0: i32) -> (i32, i32) {
    %c0_i32 = arith.constant 0 : i32
    %c0_i32_0 = arith.constant 0 : i32
    %c0_i32_1 = arith.constant 0 : i32
    return %c0_i32, %c0_i32_0 : i32, i32
  }
  func.func @transform_4(%arg0: i32) -> (i32, i32, i32) {
    %c0_i32 = arith.constant 0 : i32
    %c0_i32_0 = arith.constant 0 : i32
    %c0_i32_1 = arith.constant 0 : i32
    %c0_i32_2 = arith.constant 0 : i32
    return %c0_i32, %c0_i32_0, %c0_i32_1 : i32, i32, i32
  }
  func.func @transform_5(%arg0: i32) -> (i32, i32) {
    %c0_i32 = arith.constant 0 : i32
    %c0_i32_0 = arith.constant 0 : i32
    %c0_i32_1 = arith.constant 0 : i32
    return %c0_i32, %c0_i32_0 : i32, i32
  }
  func.func @transform_6(%arg0: i32) -> (i32, i32, i32) {
    %c0_i32 = arith.constant 0 : i32
    %c0_i32_0 = arith.constant 0 : i32
    %c0_i32_1 = arith.constant 0 : i32
    %c0_i32_2 = arith.constant 0 : i32
    return %c0_i32, %c0_i32_0, %c0_i32_1 : i32, i32, i32
  }
  func.func @transform_7(%arg0: i32) -> (i32, i32) {
    %c0_i32 = arith.constant 0 : i32
    %c0_i32_0 = arith.constant 0 : i32
    %c0_i32_1 = arith.constant 0 : i32
    return %c0_i32, %c0_i32_0 : i32, i32
  }
  func.func @transform_8(%arg0: i32) -> (i32, i32, i32) {
    %c0_i32 = arith.constant 0 : i32
    %c0_i32_0 = arith.constant 0 : i32
    %c0_i32_1 = arith.constant 0 : i32
    return %arg0, %c0_i32, %c0_i32_0 : i32, i32, i32
  }
}

</mosaic_0001>

<llo_original>
// kernel: tpu_custom_call.1
$region0: #{tpu_custom_call.1}
  #allocation0 [shape = 'u32[]', space=smem, size = 0x4, offset = 0x4, fixed_abs, tag = 'smem constant byte address 0x4 - core index']
  #allocation1 [shape = 'u32[144,128]{1,0:T(1,128)}', space=vmem, size = 0x12000, scoped, tag = 'internal scratch']
  %s0 = inlined_call_operand.vmem [shape: f32[8,8,512], index: 0, kind: input, shape index: {}]
  %s1 = inlined_call_operand.vmem [shape: bf16[512,32], index: 1, kind: input, shape index: {}]
  %s2 = inlined_call_operand.vmem [shape: bf16[3,32,32], index: 2, kind: input, shape index: {}]
  %s3 = inlined_call_operand.vmem [shape: bf16[32,512], index: 3, kind: input, shape index: {}]
  %s4 = inlined_call_operand.vmem [shape: bf16[3,512,32], index: 4, kind: input, shape index: {}]
  %s5 = inlined_call_operand.vmem [shape: bf16[32,512], index: 5, kind: input, shape index: {}]
  %s6 = inlined_call_operand.vmem [shape: bf16[2,32,32], index: 6, kind: input, shape index: {}]
  %s7 = inlined_call_operand.vmem [shape: f32[8,512], index: 7, kind: input, shape index: {}]
  %s8 = inlined_call_operand.hbm [shape: f32[8,8,512], index: 8, kind: output, shape index: {}]
  %s9 = sld [smem:[#allocation0]]
  $region65: #{tpu_custom_call.1} parent=0
    _
  %s11 = ssub.s32 1, %s9
  %s12 = scalar_select 0, %s11, %s9
  $region1: #{tpu_custom_call.1} parent=0
    #allocation2 [shape = 'u8[131072]{0}', space=vmem, size = 0x20000, scoped, tag = 'output window, operand 0']
    #allocation3 [shape = 's32[2]{0}', space=sflag, size = 0x8, scoped, tag = 'scoped memory for tpu_custom_call.1']
    %13 = vsyncpa [#allocation3], 0
    %s14 = scalar_lea.sflag [#allocation3], 1
    %15 = vsyncpa %s14, 0
    loop: start=0, step=1, limit=4
    $region2: #{tpu_custom_call.1} parent=1 // loop_pre_header
      _
    $region3: #{tpu_custom_call.1} parent=1 // loop_header
      %s17 = sphi 0, %s21
      %p18 = scmp.ge.s32.totalorder %s17, 4
      %s27 = sphi 0, %s29
      %s30 = sphi 0, %s27
      %s31 = sphi 0, %s30
      %s47 = sphi 0, %s31
      %s51 = sphi 0, %s51
      %s53 = sphi 0, %s51
      %s54 = sphi 0, %s53
      %s68 = sphi 0, %s54
      %s72 = sphi 0, %s72
      %s74 = sphi 0, %s72
      %s75 = sphi 0, %s74
      %s89 = sphi 0, %s75
      %s93 = sphi 0, %s93
      %s95 = sphi 0, %s93
      %s96 = sphi 0, %s95
      %s110 = sphi 0, %s96
      %s114 = sphi 0, %s114
      %s116 = sphi 0, %s114
      %s117 = sphi 0, %s116
      %s131 = sphi 0, %s117
      %s135 = sphi 0, %s135
      %s137 = sphi 0, %s135
      %s138 = sphi 0, %s137
      %s152 = sphi 0, %s138
      %s156 = sphi 0, %s156
      %s158 = sphi 0, %s156
      %s159 = sphi 0, %s158
      %s173 = sphi 0, %s159
      %s177 = sphi 0, %s177
      %s179 = sphi 0, %s177
      %s180 = sphi 0, %s179
      %s194 = sphi 0, %s180
      %s200 = sphi 0, %s202
      %s203 = sphi 0, %s200
      %s204 = sphi 0, %s203
      %s220 = sphi 0, %s204
    $region4: #{tpu_custom_call.1} parent=1 // loop_header_branch
      %20 = sbr.rel (%p18) target = $region8
    $region5: #{tpu_custom_call.1} parent=1 // loop_body
      %s22 = ssub.s32 %s17, 1
      %s23 = ssub.s32 %s17, 2
      %s24 = sadd.s32 %s17, 1
      %s25 = ssub.s32 %s17, %s24
      %p26 = scmp.eq.s32.totalorder %s25, 0
      %s28 = sadd.s32 %s27, 1
      %s29 = scalar_select %p26, %s27, %s28
      %p32 = pneg %p26
      %p33 = scmp.eq.s32.totalorder %s17, 1
      %p34 = por %p32, %p33
      %p35 = scmp.ne.s32.totalorder %s27, %s30
      %p36 = scmp.eq.s32.totalorder %s17, 0
      %p37 = por %p35, %p36
      %p38 = scmp.ne.s32.totalorder %s27, %s30
      %p39 = scmp.eq.s32.totalorder %s22, 1
      %p40 = por %p38, %p39
      %p41 = scmp.ne.s32.totalorder %s30, %s31
      %p42 = scmp.eq.s32.totalorder %s22, 0
      %p43 = por %p41, %p42
      %p44 = scmp.ne.s32.totalorder %s30, %s31
      %p45 = scmp.eq.s32.totalorder %s23, 1
      %p46 = por %p44, %p45
      %p48 = scmp.ne.s32.totalorder %s31, %s47
      %p49 = scmp.eq.s32.totalorder %s23, 0
      %p50 = por %p48, %p49
      %s52 = sadd.s32 %s51, 1
      %p55 = scmp.eq.s32.totalorder %s17, 1
      %p56 = scmp.ne.s32.totalorder %s51, %s53
      %p57 = scmp.eq.s32.totalorder %s17, 0
      %p58 = por %p56, %p57
      %p59 = scmp.ne.s32.totalorder %s51, %s53
      %p60 = scmp.eq.s32.totalorder %s22, 1
      %p61 = por %p59, %p60
      %p62 = scmp.ne.s32.totalorder %s53, %s54
      %p63 = scmp.eq.s32.totalorder %s22, 0
      %p64 = por %p62, %p63
      %p65 = scmp.ne.s32.totalorder %s53, %s54
      %p66 = scmp.eq.s32.totalorder %s23, 1
      %p67 = por %p65, %p66
      %p69 = scmp.ne.s32.totalorder %s54, %s68
      %p70 = scmp.eq.s32.totalorder %s23, 0
      %p71 = por %p69, %p70
      %s73 = sadd.s32 %s72, 1
      %p76 = scmp.eq.s32.totalorder %s17, 1
      %p77 = scmp.ne.s32.totalorder %s72, %s74
      %p78 = scmp.eq.s32.totalorder %s17, 0
      %p79 = por %p77, %p78
      %p80 = scmp.ne.s32.totalorder %s72, %s74
      %p81 = scmp.eq.s32.totalorder %s22, 1
      %p82 = por %p80, %p81
      %p83 = scmp.ne.s32.totalorder %s74, %s75
      %p84 = scmp.eq.s32.totalorder %s22, 0
      %p85 = por %p83, %p84
      %p86 = scmp.ne.s32.totalorder %s74, %s75
      %p87 = scmp.eq.s32.totalorder %s23, 1
      %p88 = por %p86, %p87
      %p90 = scmp.ne.s32.totalorder %s75, %s89
      %p91 = scmp.eq.s32.totalorder %s23, 0
      %p92 = por %p90, %p91
      %s94 = sadd.s32 %s93, 1
      %p97 = scmp.eq.s32.totalorder %s17, 1
      %p98 = scmp.ne.s32.totalorder %s93, %s95
      %p99 = scmp.eq.s32.totalorder %s17, 0
      %p100 = por %p98, %p99
      %p101 = scmp.ne.s32.totalorder %s93, %s95
      %p102 = scmp.eq.s32.totalorder %s22, 1
      %p103 = por %p101, %p102
      %p104 = scmp.ne.s32.totalorder %s95, %s96
      %p105 = scmp.eq.s32.totalorder %s22, 0
      %p106 = por %p104, %p105
      %p107 = scmp.ne.s32.totalorder %s95, %s96
      %p108 = scmp.eq.s32.totalorder %s23, 1
      %p109 = por %p107, %p108
      %p111 = scmp.ne.s32.totalorder %s96, %s110
      %p112 = scmp.eq.s32.totalorder %s23, 0
      %p113 = por %p111, %p112
      %s115 = sadd.s32 %s114, 1
      %p118 = scmp.eq.s32.totalorder %s17, 1
      %p119 = scmp.ne.s32.totalorder %s114, %s116
      %p120 = scmp.eq.s32.totalorder %s17, 0
      %p121 = por %p119, %p120
      %p122 = scmp.ne.s32.totalorder %s114, %s116
      %p123 = scmp.eq.s32.totalorder %s22, 1
      %p124 = por %p122, %p123
      %p125 = scmp.ne.s32.totalorder %s116, %s117
      %p126 = scmp.eq.s32.totalorder %s22, 0
      %p127 = por %p125, %p126
      %p128 = scmp.ne.s32.totalorder %s116, %s117
      %p129 = scmp.eq.s32.totalorder %s23, 1
      %p130 = por %p128, %p129
      %p132 = scmp.ne.s32.totalorder %s117, %s131
      %p133 = scmp.eq.s32.totalorder %s23, 0
      %p134 = por %p132, %p133
      %s136 = sadd.s32 %s135, 1
      %p139 = scmp.eq.s32.totalorder %s17, 1
      %p140 = scmp.ne.s32.totalorder %s135, %s137
      %p141 = scmp.eq.s32.totalorder %s17, 0
      %p142 = por %p140, %p141
      %p143 = scmp.ne.s32.totalorder %s135, %s137
      %p144 = scmp.eq.s32.totalorder %s22, 1
      %p145 = por %p143, %p144
      %p146 = scmp.ne.s32.totalorder %s137, %s138
      %p147 = scmp.eq.s32.totalorder %s22, 0
      %p148 = por %p146, %p147
      %p149 = scmp.ne.s32.totalorder %s137, %s138
      %p150 = scmp.eq.s32.totalorder %s23, 1
      %p151 = por %p149, %p150
      %p153 = scmp.ne.s32.totalorder %s138, %s152
      %p154 = scmp.eq.s32.totalorder %s23, 0
      %p155 = por %p153, %p154
      %s157 = sadd.s32 %s156, 1
      %p160 = scmp.eq.s32.totalorder %s17, 1
      %p161 = scmp.ne.s32.totalorder %s156, %s158
      %p162 = scmp.eq.s32.totalorder %s17, 0
      %p163 = por %p161, %p162
      %p164 = scmp.ne.s32.totalorder %s156, %s158
      %p165 = scmp.eq.s32.totalorder %s22, 1
      %p166 = por %p164, %p165
      %p167 = scmp.ne.s32.totalorder %s158, %s159
      %p168 = scmp.eq.s32.totalorder %s22, 0
      %p169 = por %p167, %p168
      %p170 = scmp.ne.s32.totalorder %s158, %s159
      %p171 = scmp.eq.s32.totalorder %s23, 1
      %p172 = por %p170, %p171
      %p174 = scmp.ne.s32.totalorder %s159, %s173
      %p175 = scmp.eq.s32.totalorder %s23, 0
      %p176 = por %p174, %p175
      %s178 = sadd.s32 %s177, 1
      %p181 = scmp.eq.s32.totalorder %s17, 1
      %p182 = scmp.ne.s32.totalorder %s177, %s179
      %p183 = scmp.eq.s32.totalorder %s17, 0
      %p184 = por %p182, %p183
      %p185 = scmp.ne.s32.totalorder %s177, %s179
      %p186 = scmp.eq.s32.totalorder %s22, 1
      %p187 = por %p185, %p186
      %p188 = scmp.ne.s32.totalorder %s179, %s180
      %p189 = scmp.eq.s32.totalorder %s22, 0
      %p190 = por %p188, %p189
      %p191 = scmp.ne.s32.totalorder %s179, %s180
      %p192 = scmp.eq.s32.totalorder %s23, 1
      %p193 = por %p191, %p192
      %p195 = scmp.ne.s32.totalorder %s180, %s194
      %p196 = scmp.eq.s32.totalorder %s23, 0
      %p197 = por %p195, %p196
      %s198 = ssub.s32 %s17, %s24
      %p199 = scmp.eq.s32.totalorder %s198, 0
      %s201 = sadd.s32 %s200, 1
      %s202 = scalar_select %p199, %s200, %s201
      %p205 = pneg %p199
      %p206 = scmp.eq.s32.totalorder %s17, 1
      %p207 = por %p205, %p206
      %p208 = scmp.ne.s32.totalorder %s200, %s203
      %p209 = scmp.eq.s32.totalorder %s17, 0
      %p210 = por %p208, %p209
      %p211 = scmp.ne.s32.totalorder %s200, %s203
      %p212 = scmp.eq.s32.totalorder %s22, 1
      %p213 = por %p211, %p212
      %p214 = scmp.ne.s32.totalorder %s203, %s204
      %p215 = scmp.eq.s32.totalorder %s22, 0
      %p216 = por %p214, %p215
      %p217 = scmp.ne.s32.totalorder %s203, %s204
      %p218 = scmp.eq.s32.totalorder %s23, 1
      %p219 = por %p217, %p218
      %p221 = scmp.ne.s32.totalorder %s204, %s220
      %p222 = scmp.eq.s32.totalorder %s23, 0
      %p223 = por %p221, %p222
      %p224 = scmp.le.s32.totalorder 1, %s17
      %p225 = scmp.lt.s32.totalorder %s17, 3
      %p226 = pnand %p224, %p225
      %p227 = pneg %p226
      // Predicated region
      $region9: #{tpu_custom_call.1} parent=5 // pred_check
        _
      $region10: #{tpu_custom_call.1} parent=5 // pred_check_branch
        %229 = sbr.rel (%p226) target = $region12
      $region11: #{tpu_custom_call.1} parent=5 // pred_region
        %s230 = ssub.s32 %s17, 1
        // Predicated region
        $region13: #{tpu_custom_call.1} parent=11 // pred_check
          %p231 = pneg %p64
        $region14: #{tpu_custom_call.1} parent=11 // pred_check_branch
          %233 = sbr.rel (%p231) target = $region16
        $region15: #{tpu_custom_call.1} parent=11 // pred_region
          _
        $region16: #{tpu_custom_call.1} parent=11 // pred_fallthru
          _
        // Predicated region
        $region17: #{tpu_custom_call.1} parent=11 // pred_check
          %p234 = pneg %p85
        $region18: #{tpu_custom_call.1} parent=11 // pred_check_branch
          %236 = sbr.rel (%p234) target = $region20
        $region19: #{tpu_custom_call.1} parent=11 // pred_region
          _
        $region20: #{tpu_custom_call.1} parent=11 // pred_fallthru
          _
        // Predicated region
        $region21: #{tpu_custom_call.1} parent=11 // pred_check
          %p237 = pneg %p106
        $region22: #{tpu_custom_call.1} parent=11 // pred_check_branch
          %239 = sbr.rel (%p237) target = $region24
        $region23: #{tpu_custom_call.1} parent=11 // pred_region
          _
        $region24: #{tpu_custom_call.1} parent=11 // pred_fallthru
          _
        // Predicated region
        $region25: #{tpu_custom_call.1} parent=11 // pred_check
          %p240 = pneg %p127
        $region26: #{tpu_custom_call.1} parent=11 // pred_check_branch
          %242 = sbr.rel (%p240) target = $region28
        $region27: #{tpu_custom_call.1} parent=11 // pred_region
          _
        $region28: #{tpu_custom_call.1} parent=11 // pred_fallthru
          _
        // Predicated region
        $region29: #{tpu_custom_call.1} parent=11 // pred_check
          %p243 = pneg %p148
        $region30: #{tpu_custom_call.1} parent=11 // pred_check_branch
          %245 = sbr.rel (%p243) target = $region32
        $region31: #{tpu_custom_call.1} parent=11 // pred_region
          _
        $region32: #{tpu_custom_call.1} parent=11 // pred_fallthru
          _
        // Predicated region
        $region33: #{tpu_custom_call.1} parent=11 // pred_check
          %p246 = pneg %p169
        $region34: #{tpu_custom_call.1} parent=11 // pred_check_branch
          %248 = sbr.rel (%p246) target = $region36
        $region35: #{tpu_custom_call.1} parent=11 // pred_region
          _
        $region36: #{tpu_custom_call.1} parent=11 // pred_fallthru
          _
        // Predicated region
        $region37: #{tpu_custom_call.1} parent=11 // pred_check
          %p249 = pneg %p190
        $region38: #{tpu_custom_call.1} parent=11 // pred_check_branch
          %251 = sbr.rel (%p249) target = $region40
        $region39: #{tpu_custom_call.1} parent=11 // pred_region
          _
        $region40: #{tpu_custom_call.1} parent=11 // pred_fallthru
          _
      $region12: #{tpu_custom_call.1} parent=5 // pred_fallthru
        _
      %p252 = scmp.lt.s32.totalorder %s17, 2
      // Predicated region
      $region41: #{tpu_custom_call.1} parent=5 // pred_check
        %p253 = pneg %p252
      $region42: #{tpu_custom_call.1} parent=5 // pred_check_branch
        %255 = sbr.rel (%p253) target = $region44
      $region43: #{tpu_custom_call.1} parent=5 // pred_region
        // Predicated region
        $region45: #{tpu_custom_call.1} parent=43 // pred_check
          %p256 = pneg %p37
        $region46: #{tpu_custom_call.1} parent=43 // pred_check_branch
          %258 = sbr.rel (%p256) target = $region48
        $region47: #{tpu_custom_call.1} parent=43 // pred_region
          %s259 = smul.u32 4, %s17
          %p260 = scmp.lt.s32.totalorder %s259, 7
          %s261 = scalar_select %p260, %s259, 7
          %s262 = smul.addr %s261, 4
          %s263 = smul.addr %s262, 8
          %s264 = scalar_lea.vmem %s0, %s263
          %s265 = smul.u32 4, %s17
        $region48: #{tpu_custom_call.1} parent=43 // pred_fallthru
          _
      $region44: #{tpu_custom_call.1} parent=5 // pred_fallthru
        _
      %p266 = scmp.le.s32.totalorder 1, %s17
      %p267 = scmp.lt.s32.totalorder %s17, 3
      %p268 = pnand %p266, %p267
      %p269 = pneg %p268
      // Predicated region
      $region49: #{tpu_custom_call.1} parent=5 // pred_check
        _
      $region50: #{tpu_custom_call.1} parent=5 // pred_check_branch
        %271 = sbr.rel (%p268) target = $region52
      $region51: #{tpu_custom_call.1} parent=5 // pred_region
        %s272 = ssub.s32 %s17, 1
        %s273 = smul.u32 4, %s22
        %p274 = scmp.lt.s32.totalorder %s273, 7
        %s275 = scalar_select %p274, %s273, 7
        %s276 = smul.addr %s275, 4
        %s277 = smul.addr %s276, 8
        %s278 = scalar_lea.vmem %s0, %s277
        %p279 = pneg %p43
        %p280 = pneg %p40
        %p281 = pneg %p64
        %p282 = pneg %p61
        %p283 = pneg %p85
        %p284 = pneg %p82
        %p285 = pneg %p106
        %p286 = pneg %p103
        %p287 = pneg %p127
        %p288 = pneg %p124
        %p289 = pneg %p148
        %p290 = pneg %p145
        %p291 = pneg %p169
        %p292 = pneg %p166
        %p293 = pneg %p190
        %p294 = pneg %p187
        %p295 = pneg %p216
        %p296 = pneg %p213
        %s297 = sand.u32 %s203, 1
        %s298 = scalar_lea.sflag [#allocation3], %s297
        %s299 = sand.u32 %s203, 1
        %s300 = smul.addr %s299, 128
        %s301 = scalar_lea.vmem [#allocation2], %s300
        %s302 = smul.u32 4, %s22
        %p303 = scmp.lt.s32.totalorder %s302, 7
        %s304 = scalar_select %p303, %s302, 7
        %s305 = smul.addr %s304, 4
        %s306 = smul.addr %s305, 8
        %s307 = scalar_lea.vmem %s0, %s306
        %s308 = smul.u32 4, %s22
        %s309 = smul.u32 4, %s22
        %v311 = vld [vmem:[%s307] sm:$0xff]
        %v312 = vld [vmem:[%s307 + $0x8] sm:$0xff]
        %v313 = vld [vmem:[%s307 + $0x10] sm:$0xff]
        %v314 = vld [vmem:[%s307 + $0x18] sm:$0xff]
        %v315 = vld [vmem:[%s307 + $0x20] sm:$0xff]
        %v316 = vld [vmem:[%s307 + $0x28] sm:$0xff]
        %v317 = vld [vmem:[%s307 + $0x30] sm:$0xff]
        %v318 = vld [vmem:[%s307 + $0x38] sm:$0xff]
        %v319 = vld [vmem:[%s307 + $0x40] sm:$0xff]
        %v320 = vld [vmem:[%s307 + $0x48] sm:$0xff]
        %v321 = vld [vmem:[%s307 + $0x50] sm:$0xff]
        %v322 = vld [vmem:[%s307 + $0x58] sm:$0xff]
        %v323 = vld [vmem:[%s307 + $0x60] sm:$0xff]
        %v324 = vld [vmem:[%s307 + $0x68] sm:$0xff]
        %v325 = vld [vmem:[%s307 + $0x70] sm:$0xff]
        %v326 = vld [vmem:[%s307 + $0x78] sm:$0xff]
        %v327 = vld [vmem:[%s6] sm:$0xf]
        %v328 = vld [vmem:[%s6 + $0x4] sm:$0xf]
        %v329 = vld [vmem:[%s6 + $0x8] sm:$0xf]
        %v330 = vld [vmem:[%s6 + $0xc] sm:$0xf]
        %s331 = scalar_lea.vmem %s6, 16
        %v332 = vld [vmem:[%s331] sm:$0xf]
        %v333 = vld [vmem:[%s331 + $0x4] sm:$0xf]
        %v334 = vld [vmem:[%s331 + $0x8] sm:$0xf]
        %v335 = vld [vmem:[%s331 + $0xc] sm:$0xf]
        %v336 = vld [vmem:[%s7] ss:$0 sm:$0xff]
        %v337 = vld [vmem:[%s7 + $0x1] ss:$0 sm:$0xff]
        %s338 = scalar_lea.vmem %s7, 2
        %v339 = vld [vmem:[%s338] ss:$8 sm:$0xf]
        %v340 = vld [vmem:[%s7 + $0x3] ss:$0 sm:$0xff]
        %s341 = scalar_lea.vmem %s7, 4
        %v342 = vld [vmem:[%s341] ss:$8 sm:$0xf]
        %v343 = vld [vmem:[%s1] sm:$0xf]
        %v344 = vld [vmem:[%s1 + $0x4] sm:$0xf]
        %v345 = vld [vmem:[%s1 + $0x8] sm:$0xf]
        %v346 = vld [vmem:[%s1 + $0xc] sm:$0xf]
        %v347 = vld [vmem:[%s1 + $0x10] sm:$0xf]
        %v348 = vld [vmem:[%s1 + $0x14] sm:$0xf]
        %v349 = vld [vmem:[%s1 + $0x18] sm:$0xf]
        %v350 = vld [vmem:[%s1 + $0x1c] sm:$0xf]
        %v351 = vld [vmem:[%s1 + $0x20] sm:$0xf]
        %v352 = vld [vmem:[%s1 + $0x24] sm:$0xf]
        %v353 = vld [vmem:[%s1 + $0x28] sm:$0xf]
        %v354 = vld [vmem:[%s1 + $0x2c] sm:$0xf]
        %v355 = vld [vmem:[%s1 + $0x30] sm:$0xf]
        %v356 = vld [vmem:[%s1 + $0x34] sm:$0xf]
        %v357 = vld [vmem:[%s1 + $0x38] sm:$0xf]
        %v358 = vld [vmem:[%s1 + $0x3c] sm:$0xf]
        %v359 = vld [vmem:[%s1 + $0x40] sm:$0xf]
        %v360 = vld [vmem:[%s1 + $0x44] sm:$0xf]
        %v361 = vld [vmem:[%s1 + $0x48] sm:$0xf]
        %v362 = vld [vmem:[%s1 + $0x4c] sm:$0xf]
        %v363 = vld [vmem:[%s1 + $0x50] sm:$0xf]
        %v364 = vld [vmem:[%s1 + $0x54] sm:$0xf]
        %v365 = vld [vmem:[%s1 + $0x58] sm:$0xf]
        %v366 = vld [vmem:[%s1 + $0x5c] sm:$0xf]
        %v367 = vld [vmem:[%s1 + $0x60] sm:$0xf]
        %v368 = vld [vmem:[%s1 + $0x64] sm:$0xf]
        %v369 = vld [vmem:[%s1 + $0x68] sm:$0xf]
        %v370 = vld [vmem:[%s1 + $0x6c] sm:$0xf]
        %v371 = vld [vmem:[%s1 + $0x70] sm:$0xf]
        %v372 = vld [vmem:[%s1 + $0x74] sm:$0xf]
        %v373 = vld [vmem:[%s1 + $0x78] sm:$0xf]
        %v374 = vld [vmem:[%s1 + $0x7c] sm:$0xf]
        %v375 = vld [vmem:[%s1 + $0x80] sm:$0xf]
        %v376 = vld [vmem:[%s1 + $0x84] sm:$0xf]
        %v377 = vld [vmem:[%s1 + $0x88] sm:$0xf]
        %v378 = vld [vmem:[%s1 + $0x8c] sm:$0xf]
        %v379 = vld [vmem:[%s1 + $0x90] sm:$0xf]
        %v380 = vld [vmem:[%s1 + $0x94] sm:$0xf]
        %v381 = vld [vmem:[%s1 + $0x98] sm:$0xf]
        %v382 = vld [vmem:[%s1 + $0x9c] sm:$0xf]
        %v383 = vld [vmem:[%s1 + $0xa0] sm:$0xf]
        %v384 = vld [vmem:[%s1 + $0xa4] sm:$0xf]
        %v385 = vld [vmem:[%s1 + $0xa8] sm:$0xf]
        %v386 = vld [vmem:[%s1 + $0xac] sm:$0xf]
        %v387 = vld [vmem:[%s1 + $0xb0] sm:$0xf]
        %v388 = vld [vmem:[%s1 + $0xb4] sm:$0xf]
        %v389 = vld [vmem:[%s1 + $0xb8] sm:$0xf]
        %v390 = vld [vmem:[%s1 + $0xbc] sm:$0xf]
        %v391 = vld [vmem:[%s1 + $0xc0] sm:$0xf]
        %v392 = vld [vmem:[%s1 + $0xc4] sm:$0xf]
        %v393 = vld [vmem:[%s1 + $0xc8] sm:$0xf]
        %v394 = vld [vmem:[%s1 + $0xcc] sm:$0xf]
        %v395 = vld [vmem:[%s1 + $0xd0] sm:$0xf]
        %v396 = vld [vmem:[%s1 + $0xd4] sm:$0xf]
        %v397 = vld [vmem:[%s1 + $0xd8] sm:$0xf]
        %v398 = vld [vmem:[%s1 + $0xdc] sm:$0xf]
        %v399 = vld [vmem:[%s1 + $0xe0] sm:$0xf]
        %v400 = vld [vmem:[%s1 + $0xe4] sm:$0xf]
        %v401 = vld [vmem:[%s1 + $0xe8] sm:$0xf]
        %v402 = vld [vmem:[%s1 + $0xec] sm:$0xf]
        %v403 = vld [vmem:[%s1 + $0xf0] sm:$0xf]
        %v404 = vld [vmem:[%s1 + $0xf4] sm:$0xf]
        %v405 = vld [vmem:[%s1 + $0xf8] sm:$0xf]
        %v406 = vld [vmem:[%s1 + $0xfc] sm:$0xf]
        %v407 = vpack.c.bf16 %v315, %v311
        %v408 = vpack.c.bf16 %v316, %v312
        %v409 = vpack.c.bf16 %v317, %v313
        %v410 = vpack.c.bf16 %v318, %v314
        %v411 = vpack.c.bf16 %v323, %v319
        %v412 = vpack.c.bf16 %v324, %v320
        %v413 = vpack.c.bf16 %v325, %v321
        %v414 = vpack.c.bf16 %v326, %v322
        %v479 = vunpack.c.l.b16 %v343
        %v480 = vunpack.c.l.b16 %v344
        %v481 = vunpack.c.l.b16 %v345
        %v482 = vunpack.c.l.b16 %v346
        %v483 = vunpack.c.l.b16 %v347
        %v484 = vunpack.c.l.b16 %v348
        %v485 = vunpack.c.l.b16 %v349
        %v486 = vunpack.c.l.b16 %v350
        %v487 = vunpack.c.l.b16 %v351
        %v488 = vunpack.c.l.b16 %v352
        %v489 = vunpack.c.l.b16 %v353
        %v490 = vunpack.c.l.b16 %v354
        %v491 = vunpack.c.l.b16 %v355
        %v492 = vunpack.c.l.b16 %v356
        %v493 = vunpack.c.l.b16 %v357
        %v494 = vunpack.c.l.b16 %v358
        %v495 = vunpack.c.l.b16 %v359
        %v496 = vunpack.c.l.b16 %v360
        %v497 = vunpack.c.l.b16 %v361
        %v498 = vunpack.c.l.b16 %v362
        %v499 = vunpack.c.l.b16 %v363
        %v500 = vunpack.c.l.b16 %v364
        %v501 = vunpack.c.l.b16 %v365
        %v502 = vunpack.c.l.b16 %v366
        %v503 = vunpack.c.l.b16 %v367
        %v504 = vunpack.c.l.b16 %v368
        %v505 = vunpack.c.l.b16 %v369
        %v506 = vunpack.c.l.b16 %v370
        %v507 = vunpack.c.l.b16 %v371
        %v508 = vunpack.c.l.b16 %v372
        %v509 = vunpack.c.l.b16 %v373
        %v510 = vunpack.c.l.b16 %v374
        %v511 = vunpack.c.l.b16 %v375
        %v512 = vunpack.c.l.b16 %v376
        %v513 = vunpack.c.l.b16 %v377
        %v514 = vunpack.c.l.b16 %v378
        %v515 = vunpack.c.l.b16 %v379
        %v516 = vunpack.c.l.b16 %v380
        %v517 = vunpack.c.l.b16 %v381
        %v518 = vunpack.c.l.b16 %v382
        %v519 = vunpack.c.l.b16 %v383
        %v520 = vunpack.c.l.b16 %v384
        %v521 = vunpack.c.l.b16 %v385
        %v522 = vunpack.c.l.b16 %v386
        %v523 = vunpack.c.l.b16 %v387
        %v524 = vunpack.c.l.b16 %v388
        %v525 = vunpack.c.l.b16 %v389
        %v526 = vunpack.c.l.b16 %v390
        %v527 = vunpack.c.l.b16 %v391
        %v528 = vunpack.c.l.b16 %v392
        %v529 = vunpack.c.l.b16 %v393
        %v530 = vunpack.c.l.b16 %v394
        %v531 = vunpack.c.l.b16 %v395
        %v532 = vunpack.c.l.b16 %v396
        %v533 = vunpack.c.l.b16 %v397
        %v534 = vunpack.c.l.b16 %v398
        %v535 = vunpack.c.l.b16 %v399
        %v536 = vunpack.c.l.b16 %v400
        %v537 = vunpack.c.l.b16 %v401
        %v538 = vunpack.c.l.b16 %v402
        %v539 = vunpack.c.l.b16 %v403
        %v540 = vunpack.c.l.b16 %v404
        %v541 = vunpack.c.l.b16 %v405
        %v542 = vunpack.c.l.b16 %v406
        %v543 = vpack.c.b16 %v480, %v479
        %v544 = vpack.c.b16 %v482, %v481
        %v545 = vpack.c.b16 %v484, %v483
        %v546 = vpack.c.b16 %v486, %v485
        %v547 = vpack.c.b16 %v488, %v487
        %v548 = vpack.c.b16 %v490, %v489
        %v549 = vpack.c.b16 %v492, %v491
        %v550 = vpack.c.b16 %v494, %v493
        %v551 = vpack.c.b16 %v496, %v495
        %v552 = vpack.c.b16 %v498, %v497
        %v553 = vpack.c.b16 %v500, %v499
        %v554 = vpack.c.b16 %v502, %v501
        %v555 = vpack.c.b16 %v504, %v503
        %v556 = vpack.c.b16 %v506, %v505
        %v557 = vpack.c.b16 %v508, %v507
        %v558 = vpack.c.b16 %v510, %v509
        %v559 = vpack.c.b16 %v512, %v511
        %v560 = vpack.c.b16 %v514, %v513
        %v561 = vpack.c.b16 %v516, %v515
        %v562 = vpack.c.b16 %v518, %v517
        %v563 = vpack.c.b16 %v520, %v519
        %v564 = vpack.c.b16 %v522, %v521
        %v565 = vpack.c.b16 %v524, %v523
        %v566 = vpack.c.b16 %v526, %v525
        %v567 = vpack.c.b16 %v528, %v527
        %v568 = vpack.c.b16 %v530, %v529
        %v569 = vpack.c.b16 %v532, %v531
        %v570 = vpack.c.b16 %v534, %v533
        %v571 = vpack.c.b16 %v536, %v535
        %v572 = vpack.c.b16 %v538, %v537
        %v573 = vpack.c.b16 %v540, %v539
        %v574 = vpack.c.b16 %v542, %v541
        %607 = vmatprep.subr.bf16.mxu0 0
        %608 = vmatpush1.bf16.msra.mxu0 %v543
        %609 = vmatprep.subr.bf16.mxu0 0
        %610 = vmatpush1.bf16.msra.mxu0 %v544
        %611 = vmatprep.subr.bf16.mxu0 0
        %612 = vmatpush1.bf16.msra.mxu0 %v545
        %613 = vmatprep.subr.bf16.mxu0 0
        %614 = vmatpush1.bf16.msra.mxu0 %v546
        %615 = vmatprep.subr.bf16.mxu0 0
        %616 = vmatpush1.bf16.msra.mxu0 %v547
        %617 = vmatprep.subr.bf16.mxu0 0
        %618 = vmatpush1.bf16.msra.mxu0 %v548
        %619 = vmatprep.subr.bf16.mxu0 0
        %620 = vmatpush1.bf16.msra.mxu0 %v549
        %621 = vmatprep.subr.bf16.mxu0 0
        %622 = vmatpush1.bf16.msra.mxu0 %v550
        %623 = vmatprep.subr.bf16.mxu0 0
        %624 = vmatpush1.bf16.msra.mxu0 %v551
        %625 = vmatprep.subr.bf16.mxu0 0
        %626 = vmatpush1.bf16.msra.mxu0 %v552
        %627 = vmatprep.subr.bf16.mxu0 0
        %628 = vmatpush1.bf16.msra.mxu0 %v553
        %629 = vmatprep.subr.bf16.mxu0 0
        %630 = vmatpush1.bf16.msra.mxu0 %v554
        %631 = vmatprep.subr.bf16.mxu0 0
        %632 = vmatpush1.bf16.msra.mxu0 %v555
        %633 = vmatprep.subr.bf16.mxu0 0
        %634 = vmatpush1.bf16.msra.mxu0 %v556
        %635 = vmatprep.subr.bf16.mxu0 0
        %636 = vmatpush1.bf16.msra.mxu0 %v557
        %637 = vmatprep.subr.bf16.mxu0 0
        %638 = vmatpush1.bf16.msra.mxu0 %v558
        %639 = vmatprep.mubr.bf16.mxu0 %v408
        %640 = vmatmul.mubr.bf16.gmra.mrb[0].mxu0 %v407
        %v641 = vpop.f32.mrb[0].mxu0
        %v642 = vadd.f32 %v336, %v641
        %v643 = vpop.f32.mrb[0].mxu0
        %v644 = vpop.f32.mrb[0].mxu0
        %v645 = vadd.f32 %v336, %v644
        %v646 = vpop.f32.mrb[0].mxu0
        %647 = vmatprep.mubr.bf16.mxu0 %v412
        %648 = vmatmul.mubr.bf16.gmra.mrb[0].mxu0 %v411
        %v649 = vpop.f32.mrb[0].mxu0
        %v650 = vadd.f32 %v336, %v649
        %v651 = vpop.f32.mrb[0].mxu0
        %v652 = vpop.f32.mrb[0].mxu0
        %v653 = vadd.f32 %v336, %v652
        %v654 = vpop.f32.mrb[0].mxu0
        %655 = vdwg.mxu0
        %656 = vmatprep.subr.bf16.mxu0 0
        %657 = vmatpush1.bf16.msra.mxu0 %v559
        %658 = vmatprep.subr.bf16.mxu0 0
        %659 = vmatpush1.bf16.msra.mxu0 %v560
        %660 = vmatprep.subr.bf16.mxu0 0
        %661 = vmatpush1.bf16.msra.mxu0 %v561
        %662 = vmatprep.subr.bf16.mxu0 0
        %663 = vmatpush1.bf16.msra.mxu0 %v562
        %664 = vmatprep.subr.bf16.mxu0 0
        %665 = vmatpush1.bf16.msra.mxu0 %v563
        %666 = vmatprep.subr.bf16.mxu0 0
        %667 = vmatpush1.bf16.msra.mxu0 %v564
        %668 = vmatprep.subr.bf16.mxu0 0
        %669 = vmatpush1.bf16.msra.mxu0 %v565
        %670 = vmatprep.subr.bf16.mxu0 0
        %671 = vmatpush1.bf16.msra.mxu0 %v566
        %672 = vmatprep.subr.bf16.mxu0 0
        %673 = vmatpush1.bf16.msra.mxu0 %v567
        %674 = vmatprep.subr.bf16.mxu0 0
        %675 = vmatpush1.bf16.msra.mxu0 %v568
        %676 = vmatprep.subr.bf16.mxu0 0
        %677 = vmatpush1.bf16.msra.mxu0 %v569
        %678 = vmatprep.subr.bf16.mxu0 0
        %679 = vmatpush1.bf16.msra.mxu0 %v570
        %680 = vmatprep.subr.bf16.mxu0 0
        %681 = vmatpush1.bf16.msra.mxu0 %v571
        %682 = vmatprep.subr.bf16.mxu0 0
        %683 = vmatpush1.bf16.msra.mxu0 %v572
        %684 = vmatprep.subr.bf16.mxu0 0
        %685 = vmatpush1.bf16.msra.mxu0 %v573
        %686 = vmatprep.subr.bf16.mxu0 0
        %687 = vmatpush1.bf16.msra.mxu0 %v574
        %688 = vmatprep.mubr.bf16.mxu0 %v410
        %689 = vmatmul.mubr.bf16.gmra.mrb[0].mxu0 %v409
        %v690 = vpop.f32.mrb[0].mxu0
        %v691 = vadd.f32 %v642, %v690
        %v692 = vpop.f32.mrb[0].mxu0
        %v693 = vpop.f32.mrb[0].mxu0
        %v694 = vadd.f32 %v645, %v693
        %v695 = vpop.f32.mrb[0].mxu0
        %696 = vmatprep.mubr.bf16.mxu0 %v414
        %697 = vmatmul.mubr.bf16.gmra.mrb[0].mxu0 %v413
        %v698 = vpop.f32.mrb[0].mxu0
        %v699 = vadd.f32 %v650, %v698
        %v700 = vpop.f32.mrb[0].mxu0
        %v701 = vpop.f32.mrb[0].mxu0
        %v702 = vadd.f32 %v653, %v701
        %v703 = vpop.f32.mrb[0].mxu0
        %704 = vdwg.mxu0
        %v705 = vmax.f32 %v691, 0.0
        %v706 = vmax.f32 %v694, 0.0
        %v707 = vmax.f32 %v699, 0.0
        %v708 = vmax.f32 %v702, 0.0
        %v709 = vpack.c.bf16 %v706, %v705
        %v710 = vpack.c.bf16 %v708, %v707
        %v715 = vunpack.c.l.b16 %v327
        %v716 = vunpack.c.l.b16 %v328
        %v717 = vunpack.c.l.b16 %v329
        %v718 = vunpack.c.l.b16 %v330
        %v719 = vpack.c.b16 %v716, %v715
        %v720 = vpack.c.b16 %v718, %v717
        %vm721 = vcmask 261120
        %v723 = vsel %vm721, %v719, 0
        %v726 = vsel %vm721, %v720, 0
        %728 = vmatprep.subr.bf16.mxu0 0
        %729 = vmatpush1.bf16.msra.mxu0 %v709
        %730 = vmatprep.subr.bf16.mxu0 0
        %731 = vmatpush1.bf16.msra.mxu0 %v710
        %732 = vmatprep.subr.bf16.mxu0 0
        %733 = vmatpush1.bf16.msra.mxu0 0
        %734 = vmatprep.subr.bf16.mxu0 0
        %735 = vmatpush1.bf16.msra.mxu0 0
        %736 = vmatprep.subr.bf16.mxu0 0
        %737 = vmatpush1.bf16.msra.mxu0 0
        %738 = vmatprep.subr.bf16.mxu0 0
        %739 = vmatpush1.bf16.msra.mxu0 0
        %740 = vmatprep.subr.bf16.mxu0 0
        %741 = vmatpush1.bf16.msra.mxu0 0
        %742 = vmatprep.subr.bf16.mxu0 0
        %743 = vmatpush1.bf16.msra.mxu0 0
        %744 = vmatprep.subr.bf16.mxu0 0
        %745 = vmatpush1.bf16.msra.mxu0 0
        %746 = vmatprep.subr.bf16.mxu0 0
        %747 = vmatpush1.bf16.msra.mxu0 0
        %748 = vmatprep.subr.bf16.mxu0 0
        %749 = vmatpush1.bf16.msra.mxu0 0
        %750 = vmatprep.subr.bf16.mxu0 0
        %751 = vmatpush1.bf16.msra.mxu0 0
        %752 = vmatprep.subr.bf16.mxu0 0
        %753 = vmatpush1.bf16.msra.mxu0 0
        %754 = vmatprep.subr.bf16.mxu0 0
        %755 = vmatpush1.bf16.msra.mxu0 0
        %756 = vmatprep.subr.bf16.mxu0 0
        %757 = vmatpush1.bf16.msra.mxu0 0
        %758 = vmatprep.subr.bf16.mxu0 0
        %759 = vmatpush1.bf16.msra.mxu0 0
        %760 = vmatprep.mubr.bf16.mxu0 0
        %761 = vmatmul.mubr.bf16.gmra.mrb[0].mxu0 %v723
        %v762 = vpop.f32.mrb[0].mxu0
        %v763 = vadd.f32 0.0, %v762
        %v764 = vpop.f32.mrb[0].mxu0
        %v765 = vpop.f32.mrb[0].mxu0
        %v766 = vadd.f32 0.0, %v765
        %v767 = vpop.f32.mrb[0].mxu0
        %768 = vmatprep.mubr.bf16.mxu0 0
        %769 = vmatmul.mubr.bf16.gmra.mrb[0].mxu0 %v726
        %v770 = vpop.f32.mrb[0].mxu0
        %v771 = vadd.f32 0.0, %v770
        %v772 = vpop.f32.mrb[0].mxu0
        %v773 = vpop.f32.mrb[0].mxu0
        %v774 = vadd.f32 0.0, %v773
        %v775 = vpop.f32.mrb[0].mxu0
        %776 = vdwg.mxu0
        %v781 = vunpack.c.l.b16 %v332
        %v782 = vunpack.c.l.b16 %v333
        %v783 = vunpack.c.l.b16 %v334
        %v784 = vunpack.c.l.b16 %v335
        %v785 = vpack.c.b16 %v782, %v781
        %v786 = vpack.c.b16 %v784, %v783
        %v788 = vsel %vm721, %v785, 0
        %v791 = vsel %vm721, %v786, 0
        %793 = vmatprep.subr.bf16.mxu0 0
        %794 = vmatpush1.bf16.msra.mxu0 %v709
        %795 = vmatprep.subr.bf16.mxu0 0
        %796 = vmatpush1.bf16.msra.mxu0 %v710
        %797 = vmatprep.subr.bf16.mxu0 0
        %798 = vmatpush1.bf16.msra.mxu0 0
        %799 = vmatprep.subr.bf16.mxu0 0
        %800 = vmatpush1.bf16.msra.mxu0 0
        %801 = vmatprep.subr.bf16.mxu0 0
        %802 = vmatpush1.bf16.msra.mxu0 0
        %803 = vmatprep.subr.bf16.mxu0 0
        %804 = vmatpush1.bf16.msra.mxu0 0
        %805 = vmatprep.subr.bf16.mxu0 0
        %806 = vmatpush1.bf16.msra.mxu0 0
        %807 = vmatprep.subr.bf16.mxu0 0
        %808 = vmatpush1.bf16.msra.mxu0 0
        %809 = vmatprep.subr.bf16.mxu0 0
        %810 = vmatpush1.bf16.msra.mxu0 0
        %811 = vmatprep.subr.bf16.mxu0 0
        %812 = vmatpush1.bf16.msra.mxu0 0
        %813 = vmatprep.subr.bf16.mxu0 0
        %814 = vmatpush1.bf16.msra.mxu0 0
        %815 = vmatprep.subr.bf16.mxu0 0
        %816 = vmatpush1.bf16.msra.mxu0 0
        %817 = vmatprep.subr.bf16.mxu0 0
        %818 = vmatpush1.bf16.msra.mxu0 0
        %819 = vmatprep.subr.bf16.mxu0 0
        %820 = vmatpush1.bf16.msra.mxu0 0
        %821 = vmatprep.subr.bf16.mxu0 0
        %822 = vmatpush1.bf16.msra.mxu0 0
        %823 = vmatprep.subr.bf16.mxu0 0
        %824 = vmatpush1.bf16.msra.mxu0 0
        %825 = vmatprep.mubr.bf16.mxu0 0
        %826 = vmatmul.mubr.bf16.gmra.mrb[0].mxu0 %v788
        %v827 = vpop.f32.mrb[0].mxu0
        %v828 = vadd.f32 0.0, %v827
        %v829 = vpop.f32.mrb[0].mxu0
        %v830 = vpop.f32.mrb[0].mxu0
        %v831 = vadd.f32 0.0, %v830
        %v832 = vpop.f32.mrb[0].mxu0
        %833 = vmatprep.mubr.bf16.mxu0 0
        %834 = vmatmul.mubr.bf16.gmra.mrb[0].mxu0 %v791
        %v835 = vpop.f32.mrb[0].mxu0
        %v836 = vadd.f32 0.0, %v835
        %v837 = vpop.f32.mrb[0].mxu0
        %v838 = vpop.f32.mrb[0].mxu0
        %v839 = vadd.f32 0.0, %v838
        %v840 = vpop.f32.mrb[0].mxu0
        %841 = vdwg.mxu0
        %v842 = vld [vmem:[%s2] sm:$0xf]
        %v843 = vld [vmem:[%s2 + $0x4] sm:$0xf]
        %v844 = vld [vmem:[%s2 + $0x8] sm:$0xf]
        %v845 = vld [vmem:[%s2 + $0xc] sm:$0xf]
        %v846 = vpack.c.bf16 %v766, %v763
        %v847 = vpack.c.bf16 %v774, %v771
        %s848 = scalar_lea.vmem %s2, 16
        %v849 = vld [vmem:[%s848] sm:$0xf]
        %v850 = vld [vmem:[%s848 + $0x4] sm:$0xf]
        %v851 = vld [vmem:[%s848 + $0x8] sm:$0xf]
        %v852 = vld [vmem:[%s848 + $0xc] sm:$0xf]
        %v857 = vunpack.c.l.b16 %v849
        %v858 = vunpack.c.l.b16 %v850
        %v859 = vunpack.c.l.b16 %v851
        %v860 = vunpack.c.l.b16 %v852
        %v861 = vpack.c.b16 %v858, %v857
        %v862 = vpack.c.b16 %v860, %v859
        %v866 = vsel %vm721, %v709, 0
        %v869 = vsel %vm721, %v710, 0
        %871 = vmatprep.subr.bf16.mxu0 0
        %872 = vmatpush1.bf16.msra.mxu0 %v861
        %873 = vmatprep.subr.bf16.mxu0 0
        %874 = vmatpush1.bf16.msra.mxu0 %v862
        %875 = vmatprep.subr.bf16.mxu0 0
        %876 = vmatpush1.bf16.msra.mxu0 0
        %877 = vmatprep.subr.bf16.mxu0 0
        %878 = vmatpush1.bf16.msra.mxu0 0
        %879 = vmatprep.subr.bf16.mxu0 0
        %880 = vmatpush1.bf16.msra.mxu0 0
        %881 = vmatprep.subr.bf16.mxu0 0
        %882 = vmatpush1.bf16.msra.mxu0 0
        %883 = vmatprep.subr.bf16.mxu0 0
        %884 = vmatpush1.bf16.msra.mxu0 0
        %885 = vmatprep.subr.bf16.mxu0 0
        %886 = vmatpush1.bf16.msra.mxu0 0
        %887 = vmatprep.subr.bf16.mxu0 0
        %888 = vmatpush1.bf16.msra.mxu0 0
        %889 = vmatprep.subr.bf16.mxu0 0
        %890 = vmatpush1.bf16.msra.mxu0 0
        %891 = vmatprep.subr.bf16.mxu0 0
        %892 = vmatpush1.bf16.msra.mxu0 0
        %893 = vmatprep.subr.bf16.mxu0 0
        %894 = vmatpush1.bf16.msra.mxu0 0
        %895 = vmatprep.subr.bf16.mxu0 0
        %896 = vmatpush1.bf16.msra.mxu0 0
        %897 = vmatprep.subr.bf16.mxu0 0
        %898 = vmatpush1.bf16.msra.mxu0 0
        %899 = vmatprep.subr.bf16.mxu0 0
        %900 = vmatpush1.bf16.msra.mxu0 0
        %901 = vmatprep.subr.bf16.mxu0 0
        %902 = vmatpush1.bf16.msra.mxu0 0
        %903 = vmatprep.mubr.bf16.mxu0 0
        %904 = vmatmul.mubr.bf16.gmra.mrb[0].mxu0 %v866
        %v905 = vpop.f32.mrb[0].mxu0
        %v906 = vadd.f32 0.0, %v905
        %v907 = vpop.f32.mrb[0].mxu0
        %v908 = vpop.f32.mrb[0].mxu0
        %v909 = vadd.f32 0.0, %v908
        %v910 = vpop.f32.mrb[0].mxu0
        %911 = vmatprep.mubr.bf16.mxu0 0
        %912 = vmatmul.mubr.bf16.gmra.mrb[0].mxu0 %v869
        %v913 = vpop.f32.mrb[0].mxu0
        %v914 = vadd.f32 0.0, %v913
        %v915 = vpop.f32.mrb[0].mxu0
        %v916 = vpop.f32.mrb[0].mxu0
        %v917 = vadd.f32 0.0, %v916
        %v918 = vpop.f32.mrb[0].mxu0
        %919 = vdwg.mxu0
        %v924 = vunpack.c.l.b16 %v842
        %v925 = vunpack.c.l.b16 %v843
        %v926 = vunpack.c.l.b16 %v844
        %v927 = vunpack.c.l.b16 %v845
        %v928 = vpack.c.b16 %v925, %v924
        %v929 = vpack.c.b16 %v927, %v926
        %v933 = vsel %vm721, %v846, 0
        %v936 = vsel %vm721, %v847, 0
        %938 = vmatprep.subr.bf16.mxu0 0
        %939 = vmatpush1.bf16.msra.mxu0 %v928
        %940 = vmatprep.subr.bf16.mxu0 0
        %941 = vmatpush1.bf16.msra.mxu0 %v929
        %942 = vmatprep.subr.bf16.mxu0 0
        %943 = vmatpush1.bf16.msra.mxu0 0
        %944 = vmatprep.subr.bf16.mxu0 0
        %945 = vmatpush1.bf16.msra.mxu0 0
        %946 = vmatprep.subr.bf16.mxu0 0
        %947 = vmatpush1.bf16.msra.mxu0 0
        %948 = vmatprep.subr.bf16.mxu0 0
        %949 = vmatpush1.bf16.msra.mxu0 0
        %950 = vmatprep.subr.bf16.mxu0 0
        %951 = vmatpush1.bf16.msra.mxu0 0
        %952 = vmatprep.subr.bf16.mxu0 0
        %953 = vmatpush1.bf16.msra.mxu0 0
        %954 = vmatprep.subr.bf16.mxu0 0
        %955 = vmatpush1.bf16.msra.mxu0 0
        %956 = vmatprep.subr.bf16.mxu0 0
        %957 = vmatpush1.bf16.msra.mxu0 0
        %958 = vmatprep.subr.bf16.mxu0 0
        %959 = vmatpush1.bf16.msra.mxu0 0
        %960 = vmatprep.subr.bf16.mxu0 0
        %961 = vmatpush1.bf16.msra.mxu0 0
        %962 = vmatprep.subr.bf16.mxu0 0
        %963 = vmatpush1.bf16.msra.mxu0 0
        %964 = vmatprep.subr.bf16.mxu0 0
        %965 = vmatpush1.bf16.msra.mxu0 0
        %966 = vmatprep.subr.bf16.mxu0 0
        %967 = vmatpush1.bf16.msra.mxu0 0
        %968 = vmatprep.subr.bf16.mxu0 0
        %969 = vmatpush1.bf16.msra.mxu0 0
        %970 = vmatprep.mubr.bf16.mxu0 0
        %971 = vmatmul.mubr.bf16.gmra.mrb[0].mxu0 %v933
        %v972 = vpop.f32.mrb[0].mxu0
        %v973 = vadd.f32 %v906, %v972
        %v974 = vpop.f32.mrb[0].mxu0
        %v975 = vpop.f32.mrb[0].mxu0
        %v976 = vadd.f32 %v909, %v975
        %v977 = vpop.f32.mrb[0].mxu0
        %978 = vmatprep.mubr.bf16.mxu0 0
        %979 = vmatmul.mubr.bf16.gmra.mrb[0].mxu0 %v936
        %v980 = vpop.f32.mrb[0].mxu0
        %v981 = vadd.f32 %v914, %v980
        %v982 = vpop.f32.mrb[0].mxu0
        %v983 = vpop.f32.mrb[0].mxu0
        %v984 = vadd.f32 %v917, %v983
        %v985 = vpop.f32.mrb[0].mxu0
        %986 = vdwg.mxu0
        %s987 = scalar_lea.vmem %s2, 32
        %v988 = vld [vmem:[%s987] sm:$0xf]
        %v989 = vld [vmem:[%s987 + $0x4] sm:$0xf]
        %v990 = vld [vmem:[%s987 + $0x8] sm:$0xf]
        %v991 = vld [vmem:[%s987 + $0xc] sm:$0xf]
        %v992 = vpack.c.bf16 %v831, %v828
        %v993 = vpack.c.bf16 %v839, %v836
        %v998 = vunpack.c.l.b16 %v988
        %v999 = vunpack.c.l.b16 %v989
        %v1000 = vunpack.c.l.b16 %v990
        %v1001 = vunpack.c.l.b16 %v991
        %v1002 = vpack.c.b16 %v999, %v998
        %v1003 = vpack.c.b16 %v1001, %v1000
        %v1007 = vsel %vm721, %v992, 0
        %v1010 = vsel %vm721, %v993, 0
        %1012 = vmatprep.subr.bf16.mxu0 0
        %1013 = vmatpush1.bf16.msra.mxu0 %v1002
        %1014 = vmatprep.subr.bf16.mxu0 0
        %1015 = vmatpush1.bf16.msra.mxu0 %v1003
        %1016 = vmatprep.subr.bf16.mxu0 0
        %1017 = vmatpush1.bf16.msra.mxu0 0
        %1018 = vmatprep.subr.bf16.mxu0 0
        %1019 = vmatpush1.bf16.msra.mxu0 0
        %1020 = vmatprep.subr.bf16.mxu0 0
        %1021 = vmatpush1.bf16.msra.mxu0 0
        %1022 = vmatprep.subr.bf16.mxu0 0
        %1023 = vmatpush1.bf16.msra.mxu0 0
        %1024 = vmatprep.subr.bf16.mxu0 0
        %1025 = vmatpush1.bf16.msra.mxu0 0
        %1026 = vmatprep.subr.bf16.mxu0 0
        %1027 = vmatpush1.bf16.msra.mxu0 0
        %1028 = vmatprep.subr.bf16.mxu0 0
        %1029 = vmatpush1.bf16.msra.mxu0 0
        %1030 = vmatprep.subr.bf16.mxu0 0
        %1031 = vmatpush1.bf16.msra.mxu0 0
        %1032 = vmatprep.subr.bf16.mxu0 0
        %1033 = vmatpush1.bf16.msra.mxu0 0
        %1034 = vmatprep.subr.bf16.mxu0 0
        %1035 = vmatpush1.bf16.msra.mxu0 0
        %1036 = vmatprep.subr.bf16.mxu0 0
        %1037 = vmatpush1.bf16.msra.mxu0 0
        %1038 = vmatprep.subr.bf16.mxu0 0
        %1039 = vmatpush1.bf16.msra.mxu0 0
        %1040 = vmatprep.subr.bf16.mxu0 0
        %1041 = vmatpush1.bf16.msra.mxu0 0
        %1042 = vmatprep.subr.bf16.mxu0 0
        %1043 = vmatpush1.bf16.msra.mxu0 0
        %1044 = vmatprep.mubr.bf16.mxu0 0
        %1045 = vmatmul.mubr.bf16.gmra.mrb[0].mxu0 %v1007
        %v1046 = vpop.f32.mrb[0].mxu0
        %v1047 = vadd.f32 0.0, %v1046
        %v1048 = vpop.f32.mrb[0].mxu0
        %v1049 = vpop.f32.mrb[0].mxu0
        %v1050 = vadd.f32 0.0, %v1049
        %v1051 = vpop.f32.mrb[0].mxu0
        %1052 = vmatprep.mubr.bf16.mxu0 0
        %1053 = vmatmul.mubr.bf16.gmra.mrb[0].mxu0 %v1010
        %v1054 = vpop.f32.mrb[0].mxu0
        %v1055 = vadd.f32 0.0, %v1054
        %v1056 = vpop.f32.mrb[0].mxu0
        %v1057 = vpop.f32.mrb[0].mxu0
        %v1058 = vadd.f32 0.0, %v1057
        %v1059 = vpop.f32.mrb[0].mxu0
        %1060 = vdwg.mxu0
        %v1061 = vadd.f32 %v973, %v1047
        %v1062 = vadd.f32 %v976, %v1050
        %v1063 = vadd.f32 %v981, %v1055
        %v1064 = vadd.f32 %v984, %v1058
        %v1065 = vadd.f32 %v1061, %v337
        %v1066 = vadd.f32 %v1062, %v337
        %v1067 = vadd.f32 %v1063, %v337
        %v1068 = vadd.f32 %v1064, %v337
        %v1069 = vmax.f32 %v1065, 0.0
        %v1070 = vmax.f32 %v1066, 0.0
        %v1071 = vmax.f32 %v1067, 0.0
        %v1072 = vmax.f32 %v1068, 0.0
        %v1073 = vld [vmem:[%s3] sm:$0xff]
        %v1074 = vld [vmem:[%s3 + $0x8] sm:$0xff]
        %v1075 = vld [vmem:[%s3 + $0x10] sm:$0xff]
        %v1076 = vld [vmem:[%s3 + $0x18] sm:$0xff]
        %v1077 = vld [vmem:[%s3 + $0x20] sm:$0xff]
        %v1078 = vld [vmem:[%s3 + $0x28] sm:$0xff]
        %v1079 = vld [vmem:[%s3 + $0x30] sm:$0xff]
        %v1080 = vld [vmem:[%s3 + $0x38] sm:$0xff]
        %v1081 = vpack.c.bf16 %v1070, %v1069
        %v1082 = vpack.c.bf16 %v1072, %v1071
        %v1084 = vlaneseq
        %v1085 = vshrl.u32 %v1084, 7
        %v1086 = vsub.s32 0, %v1085
        %v1087 = vrot.slane %v339, %v1086
        %v1088 = vlaneseq
        %v1089 = vshrl.u32 %v1088, 7
        %v1090 = vsub.s32 1, %v1089
        %v1091 = vrot.slane %v339, %v1090
        %v1092 = vlaneseq
        %v1093 = vshrl.u32 %v1092, 7
        %v1094 = vsub.s32 2, %v1093
        %v1095 = vrot.slane %v339, %v1094
        %v1096 = vlaneseq
        %v1097 = vshrl.u32 %v1096, 7
        %v1098 = vsub.s32 3, %v1097
        %v1099 = vrot.slane %v339, %v1098
        %v1112 = vunpack.c.l.b16 %v1073
        %v1113 = vunpack.c.h.b16 %v1073
        %v1114 = vunpack.c.l.b16 %v1074
        %v1115 = vunpack.c.h.b16 %v1074
        %v1116 = vunpack.c.l.b16 %v1075
        %v1117 = vunpack.c.h.b16 %v1075
        %v1118 = vunpack.c.l.b16 %v1076
        %v1119 = vunpack.c.h.b16 %v1076
        %v1120 = vunpack.c.l.b16 %v1077
        %v1121 = vunpack.c.h.b16 %v1077
        %v1122 = vunpack.c.l.b16 %v1078
        %v1123 = vunpack.c.h.b16 %v1078
        %v1124 = vunpack.c.l.b16 %v1079
        %v1125 = vunpack.c.h.b16 %v1079
        %v1126 = vunpack.c.l.b16 %v1080
        %v1127 = vunpack.c.h.b16 %v1080
        %v1128 = vpack.c.b16 %v1116, %v1112
        %v1129 = vpack.c.b16 %v1117, %v1113
        %v1130 = vpack.c.b16 %v1118, %v1114
        %v1131 = vpack.c.b16 %v1119, %v1115
        %v1132 = vpack.c.b16 %v1124, %v1120
        %v1133 = vpack.c.b16 %v1125, %v1121
        %v1134 = vpack.c.b16 %v1126, %v1122
        %v1135 = vpack.c.b16 %v1127, %v1123
        %v1145 = vsel %vm721, %v1081, 0
        %v1148 = vsel %vm721, %v1082, 0
        %1150 = vmatprep.subr.bf16.mxu0 %v1129
        %1151 = vmatpush1.bf16.msra.mxu0 %v1128
        %1152 = vmatprep.subr.bf16.mxu0 %v1133
        %1153 = vmatpush1.bf16.msra.mxu0 %v1132
        %1154 = vmatprep.subr.bf16.mxu0 0
        %1155 = vmatpush1.bf16.msra.mxu0 0
        %1156 = vmatprep.subr.bf16.mxu0 0
        %1157 = vmatpush1.bf16.msra.mxu0 0
        %1158 = vmatprep.subr.bf16.mxu0 0
        %1159 = vmatpush1.bf16.msra.mxu0 0
        %1160 = vmatprep.subr.bf16.mxu0 0
        %1161 = vmatpush1.bf16.msra.mxu0 0
        %1162 = vmatprep.subr.bf16.mxu0 0
        %1163 = vmatpush1.bf16.msra.mxu0 0
        %1164 = vmatprep.subr.bf16.mxu0 0
        %1165 = vmatpush1.bf16.msra.mxu0 0
        %1166 = vmatprep.subr.bf16.mxu0 0
        %1167 = vmatpush1.bf16.msra.mxu0 0
        %1168 = vmatprep.subr.bf16.mxu0 0
        %1169 = vmatpush1.bf16.msra.mxu0 0
        %1170 = vmatprep.subr.bf16.mxu0 0
        %1171 = vmatpush1.bf16.msra.mxu0 0
        %1172 = vmatprep.subr.bf16.mxu0 0
        %1173 = vmatpush1.bf16.msra.mxu0 0
        %1174 = vmatprep.subr.bf16.mxu0 0
        %1175 = vmatpush1.bf16.msra.mxu0 0
        %1176 = vmatprep.subr.bf16.mxu0 0
        %1177 = vmatpush1.bf16.msra.mxu0 0
        %1178 = vmatprep.subr.bf16.mxu0 0
        %1179 = vmatpush1.bf16.msra.mxu0 0
        %1180 = vmatprep.subr.bf16.mxu0 0
        %1181 = vmatpush1.bf16.msra.mxu0 0
        %1182 = vmatprep.mubr.bf16.mxu0 0
        %1183 = vmatmul.mubr.bf16.gmra.mrb[0].mxu0 %v1145
        %v1184 = vpop.f32.mrb[0].mxu0
        %v1185 = vadd.f32 %v1087, %v1184
        %v1186 = vpop.f32.mrb[0].mxu0
        %v1187 = vadd.f32 %v1091, %v1186
        %v1188 = vpop.f32.mrb[0].mxu0
        %v1189 = vadd.f32 %v1087, %v1188
        %v1190 = vpop.f32.mrb[0].mxu0
        %v1191 = vadd.f32 %v1091, %v1190
        %1192 = vmatprep.mubr.bf16.mxu0 0
        %1193 = vmatmul.mubr.bf16.gmra.mrb[0].mxu0 %v1148
        %v1194 = vpop.f32.mrb[0].mxu0
        %v1195 = vadd.f32 %v1087, %v1194
        %v1196 = vpop.f32.mrb[0].mxu0
        %v1197 = vadd.f32 %v1091, %v1196
        %v1198 = vpop.f32.mrb[0].mxu0
        %v1199 = vadd.f32 %v1087, %v1198
        %v1200 = vpop.f32.mrb[0].mxu0
        %v1201 = vadd.f32 %v1091, %v1200
        %1202 = vdwg.mxu0
        %1203 = vmatprep.subr.bf16.mxu0 %v1131
        %1204 = vmatpush1.bf16.msra.mxu0 %v1130
        %1205 = vmatprep.subr.bf16.mxu0 %v1135
        %1206 = vmatpush1.bf16.msra.mxu0 %v1134
        %1207 = vmatprep.subr.bf16.mxu0 0
        %1208 = vmatpush1.bf16.msra.mxu0 0
        %1209 = vmatprep.subr.bf16.mxu0 0
        %1210 = vmatpush1.bf16.msra.mxu0 0
        %1211 = vmatprep.subr.bf16.mxu0 0
        %1212 = vmatpush1.bf16.msra.mxu0 0
        %1213 = vmatprep.subr.bf16.mxu0 0
        %1214 = vmatpush1.bf16.msra.mxu0 0
        %1215 = vmatprep.subr.bf16.mxu0 0
        %1216 = vmatpush1.bf16.msra.mxu0 0
        %1217 = vmatprep.subr.bf16.mxu0 0
        %1218 = vmatpush1.bf16.msra.mxu0 0
        %1219 = vmatprep.subr.bf16.mxu0 0
        %1220 = vmatpush1.bf16.msra.mxu0 0
        %1221 = vmatprep.subr.bf16.mxu0 0
        %1222 = vmatpush1.bf16.msra.mxu0 0
        %1223 = vmatprep.subr.bf16.mxu0 0
        %1224 = vmatpush1.bf16.msra.mxu0 0
        %1225 = vmatprep.subr.bf16.mxu0 0
        %1226 = vmatpush1.bf16.msra.mxu0 0
        %1227 = vmatprep.subr.bf16.mxu0 0
        %1228 = vmatpush1.bf16.msra.mxu0 0
        %1229 = vmatprep.subr.bf16.mxu0 0
        %1230 = vmatpush1.bf16.msra.mxu0 0
        %1231 = vmatprep.subr.bf16.mxu0 0
        %1232 = vmatpush1.bf16.msra.mxu0 0
        %1233 = vmatprep.subr.bf16.mxu0 0
        %1234 = vmatpush1.bf16.msra.mxu0 0
        %1235 = vmatprep.mubr.bf16.mxu0 0
        %1236 = vmatmul.mubr.bf16.gmra.mrb[0].mxu0 %v1145
        %v1237 = vpop.f32.mrb[0].mxu0
        %v1238 = vadd.f32 %v1095, %v1237
        %v1239 = vpop.f32.mrb[0].mxu0
        %v1240 = vadd.f32 %v1099, %v1239
        %v1241 = vpop.f32.mrb[0].mxu0
        %v1242 = vadd.f32 %v1095, %v1241
        %v1243 = vpop.f32.mrb[0].mxu0
        %v1244 = vadd.f32 %v1099, %v1243
        %1245 = vmatprep.mubr.bf16.mxu0 0
        %1246 = vmatmul.mubr.bf16.gmra.mrb[0].mxu0 %v1148
        %v1247 = vpop.f32.mrb[0].mxu0
        %v1248 = vadd.f32 %v1095, %v1247
        %v1249 = vpop.f32.mrb[0].mxu0
        %v1250 = vadd.f32 %v1099, %v1249
        %v1251 = vpop.f32.mrb[0].mxu0
        %v1252 = vadd.f32 %v1095, %v1251
        %v1253 = vpop.f32.mrb[0].mxu0
        %v1254 = vadd.f32 %v1099, %v1253
        %1255 = vdwg.mxu0
        %v1256 = vmul.f32 %v311, 0.5
        %v1257 = vmul.f32 %v312, 0.5
        %v1258 = vmul.f32 %v313, 0.5
        %v1259 = vmul.f32 %v314, 0.5
        %v1260 = vmul.f32 %v315, 0.5
        %v1261 = vmul.f32 %v316, 0.5
        %v1262 = vmul.f32 %v317, 0.5
        %v1263 = vmul.f32 %v318, 0.5
        %v1264 = vmul.f32 %v319, 0.5
        %v1265 = vmul.f32 %v320, 0.5
        %v1266 = vmul.f32 %v321, 0.5
        %v1267 = vmul.f32 %v322, 0.5
        %v1268 = vmul.f32 %v323, 0.5
        %v1269 = vmul.f32 %v324, 0.5
        %v1270 = vmul.f32 %v325, 0.5
        %v1271 = vmul.f32 %v326, 0.5
        %v1272 = vadd.f32 %v1185, %v1256
        %v1273 = vadd.f32 %v1187, %v1257
        %v1274 = vadd.f32 %v1238, %v1258
        %v1275 = vadd.f32 %v1240, %v1259
        %v1276 = vadd.f32 %v1189, %v1260
        %v1277 = vadd.f32 %v1191, %v1261
        %v1278 = vadd.f32 %v1242, %v1262
        %v1279 = vadd.f32 %v1244, %v1263
        %v1280 = vadd.f32 %v1195, %v1264
        %v1281 = vadd.f32 %v1197, %v1265
        %v1282 = vadd.f32 %v1248, %v1266
        %v1283 = vadd.f32 %v1250, %v1267
        %v1284 = vadd.f32 %v1199, %v1268
        %v1285 = vadd.f32 %v1201, %v1269
        %v1286 = vadd.f32 %v1252, %v1270
        %v1287 = vadd.f32 %v1254, %v1271
        %v1288 = vmax.f32 %v1272, 0.0
        %v1289 = vmax.f32 %v1273, 0.0
        %v1290 = vmax.f32 %v1274, 0.0
        %v1291 = vmax.f32 %v1275, 0.0
        %v1292 = vmax.f32 %v1276, 0.0
        %v1293 = vmax.f32 %v1277, 0.0
        %v1294 = vmax.f32 %v1278, 0.0
        %v1295 = vmax.f32 %v1279, 0.0
        %v1296 = vmax.f32 %v1280, 0.0
        %v1297 = vmax.f32 %v1281, 0.0
        %v1298 = vmax.f32 %v1282, 0.0
        %v1299 = vmax.f32 %v1283, 0.0
        %v1300 = vmax.f32 %v1284, 0.0
        %v1301 = vmax.f32 %v1285, 0.0
        %v1302 = vmax.f32 %v1286, 0.0
        %v1303 = vmax.f32 %v1287, 0.0
        %v1304 = vpack.c.bf16 %v1292, %v1288
        %v1305 = vpack.c.bf16 %v1293, %v1289
        %v1306 = vpack.c.bf16 %v1294, %v1290
        %v1307 = vpack.c.bf16 %v1295, %v1291
        %v1308 = vpack.c.bf16 %v1300, %v1296
        %v1309 = vpack.c.bf16 %v1301, %v1297
        %v1310 = vpack.c.bf16 %v1302, %v1298
        %v1311 = vpack.c.bf16 %v1303, %v1299
        %1312 = vmatprep.subr.bf16.mxu0 %v1305
        %1313 = vmatpush1.bf16.msra.mxu0 %v1304
        %1314 = vmatprep.subr.bf16.mxu0 %v1309
        %1315 = vmatpush1.bf16.msra.mxu0 %v1308
        %1316 = vmatprep.subr.bf16.mxu0 0
        %1317 = vmatpush1.bf16.msra.mxu0 0
        %1318 = vmatprep.subr.bf16.mxu0 0
        %1319 = vmatpush1.bf16.msra.mxu0 0
        %1320 = vmatprep.subr.bf16.mxu0 0
        %1321 = vmatpush1.bf16.msra.mxu0 0
        %1322 = vmatprep.subr.bf16.mxu0 0
        %1323 = vmatpush1.bf16.msra.mxu0 0
        %1324 = vmatprep.subr.bf16.mxu0 0
        %1325 = vmatpush1.bf16.msra.mxu0 0
        %1326 = vmatprep.subr.bf16.mxu0 0
        %1327 = vmatpush1.bf16.msra.mxu0 0
        %1328 = vmatprep.subr.bf16.mxu0 0
        %1329 = vmatpush1.bf16.msra.mxu0 0
        %1330 = vmatprep.subr.bf16.mxu0 0
        %1331 = vmatpush1.bf16.msra.mxu0 0
        %1332 = vmatprep.subr.bf16.mxu0 0
        %1333 = vmatpush1.bf16.msra.mxu0 0
        %1334 = vmatprep.subr.bf16.mxu0 0
        %1335 = vmatpush1.bf16.msra.mxu0 0
        %1336 = vmatprep.subr.bf16.mxu0 0
        %1337 = vmatpush1.bf16.msra.mxu0 0
        %1338 = vmatprep.subr.bf16.mxu0 0
        %1339 = vmatpush1.bf16.msra.mxu0 0
        %1340 = vmatprep.subr.bf16.mxu0 0
        %1341 = vmatpush1.bf16.msra.mxu0 0
        %1342 = vmatprep.subr.bf16.mxu0 0
        %1343 = vmatpush1.bf16.msra.mxu0 0
        %1344 = vmatprep.mubr.bf16.mxu0 0
        %1345 = vmatmul.mubr.bf16.gmra.mrb[0].mxu0 %v723
        %v1346 = vpop.f32.mrb[0].mxu0
        %v1347 = vadd.f32 0.0, %v1346
        %v1348 = vpop.f32.mrb[0].mxu0
        %v1349 = vadd.f32 0.0, %v1348
        %v1350 = vpop.f32.mrb[0].mxu0
        %v1351 = vadd.f32 0.0, %v1350
        %v1352 = vpop.f32.mrb[0].mxu0
        %v1353 = vadd.f32 0.0, %v1352
        %1354 = vmatprep.mubr.bf16.mxu0 0
        %1355 = vmatmul.mubr.bf16.gmra.mrb[0].mxu0 %v726
        %v1356 = vpop.f32.mrb[0].mxu0
        %v1357 = vadd.f32 0.0, %v1356
        %v1358 = vpop.f32.mrb[0].mxu0
        %v1359 = vadd.f32 0.0, %v1358
        %v1360 = vpop.f32.mrb[0].mxu0
        %v1361 = vadd.f32 0.0, %v1360
        %v1362 = vpop.f32.mrb[0].mxu0
        %v1363 = vadd.f32 0.0, %v1362
        %1364 = vdwg.mxu0
        %1365 = vmatprep.subr.bf16.mxu0 %v1307
        %1366 = vmatpush1.bf16.msra.mxu0 %v1306
        %1367 = vmatprep.subr.bf16.mxu0 %v1311
        %1368 = vmatpush1.bf16.msra.mxu0 %v1310
        %1369 = vmatprep.subr.bf16.mxu0 0
        %1370 = vmatpush1.bf16.msra.mxu0 0
        %1371 = vmatprep.subr.bf16.mxu0 0
        %1372 = vmatpush1.bf16.msra.mxu0 0
        %1373 = vmatprep.subr.bf16.mxu0 0
        %1374 = vmatpush1.bf16.msra.mxu0 0
        %1375 = vmatprep.subr.bf16.mxu0 0
        %1376 = vmatpush1.bf16.msra.mxu0 0
        %1377 = vmatprep.subr.bf16.mxu0 0
        %1378 = vmatpush1.bf16.msra.mxu0 0
        %1379 = vmatprep.subr.bf16.mxu0 0
        %1380 = vmatpush1.bf16.msra.mxu0 0
        %1381 = vmatprep.subr.bf16.mxu0 0
        %1382 = vmatpush1.bf16.msra.mxu0 0
        %1383 = vmatprep.subr.bf16.mxu0 0
        %1384 = vmatpush1.bf16.msra.mxu0 0
        %1385 = vmatprep.subr.bf16.mxu0 0
        %1386 = vmatpush1.bf16.msra.mxu0 0
        %1387 = vmatprep.subr.bf16.mxu0 0
        %1388 = vmatpush1.bf16.msra.mxu0 0
        %1389 = vmatprep.subr.bf16.mxu0 0
        %1390 = vmatpush1.bf16.msra.mxu0 0
        %1391 = vmatprep.subr.bf16.mxu0 0
        %1392 = vmatpush1.bf16.msra.mxu0 0
        %1393 = vmatprep.subr.bf16.mxu0 0
        %1394 = vmatpush1.bf16.msra.mxu0 0
        %1395 = vmatprep.subr.bf16.mxu0 0
        %1396 = vmatpush1.bf16.msra.mxu0 0
        %1397 = vmatprep.mubr.bf16.mxu0 0
        %1398 = vmatmul.mubr.bf16.gmra.mrb[0].mxu0 %v723
        %v1399 = vpop.f32.mrb[0].mxu0
        %v1400 = vadd.f32 0.0, %v1399
        %v1401 = vpop.f32.mrb[0].mxu0
        %v1402 = vadd.f32 0.0, %v1401
        %v1403 = vpop.f32.mrb[0].mxu0
        %v1404 = vadd.f32 0.0, %v1403
        %v1405 = vpop.f32.mrb[0].mxu0
        %v1406 = vadd.f32 0.0, %v1405
        %1407 = vmatprep.mubr.bf16.mxu0 0
        %1408 = vmatmul.mubr.bf16.gmra.mrb[0].mxu0 %v726
        %v1409 = vpop.f32.mrb[0].mxu0
        %v1410 = vadd.f32 0.0, %v1409
        %v1411 = vpop.f32.mrb[0].mxu0
        %v1412 = vadd.f32 0.0, %v1411
        %v1413 = vpop.f32.mrb[0].mxu0
        %v1414 = vadd.f32 0.0, %v1413
        %v1415 = vpop.f32.mrb[0].mxu0
        %v1416 = vadd.f32 0.0, %v1415
        %1417 = vdwg.mxu0
        %1418 = vmatprep.subr.bf16.mxu0 %v1305
        %1419 = vmatpush1.bf16.msra.mxu0 %v1304
        %1420 = vmatprep.subr.bf16.mxu0 %v1309
        %1421 = vmatpush1.bf16.msra.mxu0 %v1308
        %1422 = vmatprep.subr.bf16.mxu0 0
        %1423 = vmatpush1.bf16.msra.mxu0 0
        %1424 = vmatprep.subr.bf16.mxu0 0
        %1425 = vmatpush1.bf16.msra.mxu0 0
        %1426 = vmatprep.subr.bf16.mxu0 0
        %1427 = vmatpush1.bf16.msra.mxu0 0
        %1428 = vmatprep.subr.bf16.mxu0 0
        %1429 = vmatpush1.bf16.msra.mxu0 0
        %1430 = vmatprep.subr.bf16.mxu0 0
        %1431 = vmatpush1.bf16.msra.mxu0 0
        %1432 = vmatprep.subr.bf16.mxu0 0
        %1433 = vmatpush1.bf16.msra.mxu0 0
        %1434 = vmatprep.subr.bf16.mxu0 0
        %1435 = vmatpush1.bf16.msra.mxu0 0
        %1436 = vmatprep.subr.bf16.mxu0 0
        %1437 = vmatpush1.bf16.msra.mxu0 0
        %1438 = vmatprep.subr.bf16.mxu0 0
        %1439 = vmatpush1.bf16.msra.mxu0 0
        %1440 = vmatprep.subr.bf16.mxu0 0
        %1441 = vmatpush1.bf16.msra.mxu0 0
        %1442 = vmatprep.subr.bf16.mxu0 0
        %1443 = vmatpush1.bf16.msra.mxu0 0
        %1444 = vmatprep.subr.bf16.mxu0 0
        %1445 = vmatpush1.bf16.msra.mxu0 0
        %1446 = vmatprep.subr.bf16.mxu0 0
        %1447 = vmatpush1.bf16.msra.mxu0 0
        %1448 = vmatprep.subr.bf16.mxu0 0
        %1449 = vmatpush1.bf16.msra.mxu0 0
        %1450 = vmatprep.mubr.bf16.mxu0 0
        %1451 = vmatmul.mubr.bf16.gmra.mrb[0].mxu0 %v788
        %v1452 = vpop.f32.mrb[0].mxu0
        %v1453 = vadd.f32 0.0, %v1452
        %v1454 = vpop.f32.mrb[0].mxu0
        %v1455 = vadd.f32 0.0, %v1454
        %v1456 = vpop.f32.mrb[0].mxu0
        %v1457 = vadd.f32 0.0, %v1456
        %v1458 = vpop.f32.mrb[0].mxu0
        %v1459 = vadd.f32 0.0, %v1458
        %1460 = vmatprep.mubr.bf16.mxu0 0
        %1461 = vmatmul.mubr.bf16.gmra.mrb[0].mxu0 %v791
        %v1462 = vpop.f32.mrb[0].mxu0
        %v1463 = vadd.f32 0.0, %v1462
        %v1464 = vpop.f32.mrb[0].mxu0
        %v1465 = vadd.f32 0.0, %v1464
        %v1466 = vpop.f32.mrb[0].mxu0
        %v1467 = vadd.f32 0.0, %v1466
        %v1468 = vpop.f32.mrb[0].mxu0
        %v1469 = vadd.f32 0.0, %v1468
        %1470 = vdwg.mxu0
        %1471 = vmatprep.subr.bf16.mxu0 %v1307
        %1472 = vmatpush1.bf16.msra.mxu0 %v1306
        %1473 = vmatprep.subr.bf16.mxu0 %v1311
        %1474 = vmatpush1.bf16.msra.mxu0 %v1310
        %1475 = vmatprep.subr.bf16.mxu0 0
        %1476 = vmatpush1.bf16.msra.mxu0 0
        %1477 = vmatprep.subr.bf16.mxu0 0
        %1478 = vmatpush1.bf16.msra.mxu0 0
        %1479 = vmatprep.subr.bf16.mxu0 0
        %1480 = vmatpush1.bf16.msra.mxu0 0
        %1481 = vmatprep.subr.bf16.mxu0 0
        %1482 = vmatpush1.bf16.msra.mxu0 0
        %1483 = vmatprep.subr.bf16.mxu0 0
        %1484 = vmatpush1.bf16.msra.mxu0 0
        %1485 = vmatprep.subr.bf16.mxu0 0
        %1486 = vmatpush1.bf16.msra.mxu0 0
        %1487 = vmatprep.subr.bf16.mxu0 0
        %1488 = vmatpush1.bf16.msra.mxu0 0
        %1489 = vmatprep.subr.bf16.mxu0 0
        %1490 = vmatpush1.bf16.msra.mxu0 0
        %1491 = vmatprep.subr.bf16.mxu0 0
        %1492 = vmatpush1.bf16.msra.mxu0 0
        %1493 = vmatprep.subr.bf16.mxu0 0
        %1494 = vmatpush1.bf16.msra.mxu0 0
        %1495 = vmatprep.subr.bf16.mxu0 0
        %1496 = vmatpush1.bf16.msra.mxu0 0
        %1497 = vmatprep.subr.bf16.mxu0 0
        %1498 = vmatpush1.bf16.msra.mxu0 0
        %1499 = vmatprep.subr.bf16.mxu0 0
        %1500 = vmatpush1.bf16.msra.mxu0 0
        %1501 = vmatprep.subr.bf16.mxu0 0
        %1502 = vmatpush1.bf16.msra.mxu0 0
        %1503 = vmatprep.mubr.bf16.mxu0 0
        %1504 = vmatmul.mubr.bf16.gmra.mrb[0].mxu0 %v788
        %v1505 = vpop.f32.mrb[0].mxu0
        %v1506 = vadd.f32 0.0, %v1505
        %v1507 = vpop.f32.mrb[0].mxu0
        %v1508 = vadd.f32 0.0, %v1507
        %v1509 = vpop.f32.mrb[0].mxu0
        %v1510 = vadd.f32 0.0, %v1509
        %v1511 = vpop.f32.mrb[0].mxu0
        %v1512 = vadd.f32 0.0, %v1511
        %1513 = vmatprep.mubr.bf16.mxu0 0
        %1514 = vmatmul.mubr.bf16.gmra.mrb[0].mxu0 %v791
        %v1515 = vpop.f32.mrb[0].mxu0
        %v1516 = vadd.f32 0.0, %v1515
        %v1517 = vpop.f32.mrb[0].mxu0
        %v1518 = vadd.f32 0.0, %v1517
        %v1519 = vpop.f32.mrb[0].mxu0
        %v1520 = vadd.f32 0.0, %v1519
        %v1521 = vpop.f32.mrb[0].mxu0
        %v1522 = vadd.f32 0.0, %v1521
        %1523 = vdwg.mxu0
        %v1524 = vld [vmem:[%s4] sm:$0xf]
        %v1525 = vld [vmem:[%s4 + $0x4] sm:$0xf]
        %v1526 = vld [vmem:[%s4 + $0x8] sm:$0xf]
        %v1527 = vld [vmem:[%s4 + $0xc] sm:$0xf]
        %v1528 = vld [vmem:[%s4 + $0x10] sm:$0xf]
        %v1529 = vld [vmem:[%s4 + $0x14] sm:$0xf]
        %v1530 = vld [vmem:[%s4 + $0x18] sm:$0xf]
        %v1531 = vld [vmem:[%s4 + $0x1c] sm:$0xf]
        %v1532 = vld [vmem:[%s4 + $0x20] sm:$0xf]
        %v1533 = vld [vmem:[%s4 + $0x24] sm:$0xf]
        %v1534 = vld [vmem:[%s4 + $0x28] sm:$0xf]
        %v1535 = vld [vmem:[%s4 + $0x2c] sm:$0xf]
        %v1536 = vld [vmem:[%s4 + $0x30] sm:$0xf]
        %v1537 = vld [vmem:[%s4 + $0x34] sm:$0xf]
        %v1538 = vld [vmem:[%s4 + $0x38] sm:$0xf]
        %v1539 = vld [vmem:[%s4 + $0x3c] sm:$0xf]
        %v1540 = vld [vmem:[%s4 + $0x40] sm:$0xf]
        %v1541 = vld [vmem:[%s4 + $0x44] sm:$0xf]
        %v1542 = vld [vmem:[%s4 + $0x48] sm:$0xf]
        %v1543 = vld [vmem:[%s4 + $0x4c] sm:$0xf]
        %v1544 = vld [vmem:[%s4 + $0x50] sm:$0xf]
        %v1545 = vld [vmem:[%s4 + $0x54] sm:$0xf]
        %v1546 = vld [vmem:[%s4 + $0x58] sm:$0xf]
        %v1547 = vld [vmem:[%s4 + $0x5c] sm:$0xf]
        %v1548 = vld [vmem:[%s4 + $0x60] sm:$0xf]
        %v1549 = vld [vmem:[%s4 + $0x64] sm:$0xf]
        %v1550 = vld [vmem:[%s4 + $0x68] sm:$0xf]
        %v1551 = vld [vmem:[%s4 + $0x6c] sm:$0xf]
        %v1552 = vld [vmem:[%s4 + $0x70] sm:$0xf]
        %v1553 = vld [vmem:[%s4 + $0x74] sm:$0xf]
        %v1554 = vld [vmem:[%s4 + $0x78] sm:$0xf]
        %v1555 = vld [vmem:[%s4 + $0x7c] sm:$0xf]
        %v1556 = vld [vmem:[%s4 + $0x80] sm:$0xf]
        %v1557 = vld [vmem:[%s4 + $0x84] sm:$0xf]
        %v1558 = vld [vmem:[%s4 + $0x88] sm:$0xf]
        %v1559 = vld [vmem:[%s4 + $0x8c] sm:$0xf]
        %v1560 = vld [vmem:[%s4 + $0x90] sm:$0xf]
        %v1561 = vld [vmem:[%s4 + $0x94] sm:$0xf]
        %v1562 = vld [vmem:[%s4 + $0x98] sm:$0xf]
        %v1563 = vld [vmem:[%s4 + $0x9c] sm:$0xf]
        %v1564 = vld [vmem:[%s4 + $0xa0] sm:$0xf]
        %v1565 = vld [vmem:[%s4 + $0xa4] sm:$0xf]
        %v1566 = vld [vmem:[%s4 + $0xa8] sm:$0xf]
        %v1567 = vld [vmem:[%s4 + $0xac] sm:$0xf]
        %v1568 = vld [vmem:[%s4 + $0xb0] sm:$0xf]
        %v1569 = vld [vmem:[%s4 + $0xb4] sm:$0xf]
        %v1570 = vld [vmem:[%s4 + $0xb8] sm:$0xf]
        %v1571 = vld [vmem:[%s4 + $0xbc] sm:$0xf]
        %v1572 = vld [vmem:[%s4 + $0xc0] sm:$0xf]
        %v1573 = vld [vmem:[%s4 + $0xc4] sm:$0xf]
        %v1574 = vld [vmem:[%s4 + $0xc8] sm:$0xf]
        %v1575 = vld [vmem:[%s4 + $0xcc] sm:$0xf]
        %v1576 = vld [vmem:[%s4 + $0xd0] sm:$0xf]
        %v1577 = vld [vmem:[%s4 + $0xd4] sm:$0xf]
        %v1578 = vld [vmem:[%s4 + $0xd8] sm:$0xf]
        %v1579 = vld [vmem:[%s4 + $0xdc] sm:$0xf]
        %v1580 = vld [vmem:[%s4 + $0xe0] sm:$0xf]
        %v1581 = vld [vmem:[%s4 + $0xe4] sm:$0xf]
        %v1582 = vld [vmem:[%s4 + $0xe8] sm:$0xf]
        %v1583 = vld [vmem:[%s4 + $0xec] sm:$0xf]
        %v1584 = vld [vmem:[%s4 + $0xf0] sm:$0xf]
        %v1585 = vld [vmem:[%s4 + $0xf4] sm:$0xf]
        %v1586 = vld [vmem:[%s4 + $0xf8] sm:$0xf]
        %v1587 = vld [vmem:[%s4 + $0xfc] sm:$0xf]
        %v1588 = vpack.c.bf16 %v1351, %v1347
        %v1589 = vpack.c.bf16 %v1353, %v1349
        %v1590 = vpack.c.bf16 %v1404, %v1400
        %v1591 = vpack.c.bf16 %v1406, %v1402
        %v1592 = vpack.c.bf16 %v1361, %v1357
        %v1593 = vpack.c.bf16 %v1363, %v1359
        %v1594 = vpack.c.bf16 %v1414, %v1410
        %v1595 = vpack.c.bf16 %v1416, %v1412
        %s1596 = scalar_lea.vmem %s4, 256
        %v1597 = vld [vmem:[%s1596] sm:$0xf]
        %v1598 = vld [vmem:[%s1596 + $0x4] sm:$0xf]
        %v1599 = vld [vmem:[%s1596 + $0x8] sm:$0xf]
        %v1600 = vld [vmem:[%s1596 + $0xc] sm:$0xf]
        %v1601 = vld [vmem:[%s1596 + $0x10] sm:$0xf]
        %v1602 = vld [vmem:[%s1596 + $0x14] sm:$0xf]
        %v1603 = vld [vmem:[%s1596 + $0x18] sm:$0xf]
        %v1604 = vld [vmem:[%s1596 + $0x1c] sm:$0xf]
        %v1605 = vld [vmem:[%s1596 + $0x20] sm:$0xf]
        %v1606 = vld [vmem:[%s1596 + $0x24] sm:$0xf]
        %v1607 = vld [vmem:[%s1596 + $0x28] sm:$0xf]
        %v1608 = vld [vmem:[%s1596 + $0x2c] sm:$0xf]
        %v1609 = vld [vmem:[%s1596 + $0x30] sm:$0xf]
        %v1610 = vld [vmem:[%s1596 + $0x34] sm:$0xf]
        %v1611 = vld [vmem:[%s1596 + $0x38] sm:$0xf]
        %v1612 = vld [vmem:[%s1596 + $0x3c] sm:$0xf]
        %v1613 = vld [vmem:[%s1596 + $0x40] sm:$0xf]
        %v1614 = vld [vmem:[%s1596 + $0x44] sm:$0xf]
        %v1615 = vld [vmem:[%s1596 + $0x48] sm:$0xf]
        %v1616 = vld [vmem:[%s1596 + $0x4c] sm:$0xf]
        %v1617 = vld [vmem:[%s1596 + $0x50] sm:$0xf]
        %v1618 = vld [vmem:[%s1596 + $0x54] sm:$0xf]
        %v1619 = vld [vmem:[%s1596 + $0x58] sm:$0xf]
        %v1620 = vld [vmem:[%s1596 + $0x5c] sm:$0xf]
        %v1621 = vld [vmem:[%s1596 + $0x60] sm:$0xf]
        %v1622 = vld [vmem:[%s1596 + $0x64] sm:$0xf]
        %v1623 = vld [vmem:[%s1596 + $0x68] sm:$0xf]
        %v1624 = vld [vmem:[%s1596 + $0x6c] sm:$0xf]
        %v1625 = vld [vmem:[%s1596 + $0x70] sm:$0xf]
        %v1626 = vld [vmem:[%s1596 + $0x74] sm:$0xf]
        %v1627 = vld [vmem:[%s1596 + $0x78] sm:$0xf]
        %v1628 = vld [vmem:[%s1596 + $0x7c] sm:$0xf]
        %v1629 = vld [vmem:[%s1596 + $0x80] sm:$0xf]
        %v1630 = vld [vmem:[%s1596 + $0x84] sm:$0xf]
        %v1631 = vld [vmem:[%s1596 + $0x88] sm:$0xf]
        %v1632 = vld [vmem:[%s1596 + $0x8c] sm:$0xf]
        %v1633 = vld [vmem:[%s1596 + $0x90] sm:$0xf]
        %v1634 = vld [vmem:[%s1596 + $0x94] sm:$0xf]
        %v1635 = vld [vmem:[%s1596 + $0x98] sm:$0xf]
        %v1636 = vld [vmem:[%s1596 + $0x9c] sm:$0xf]
        %v1637 = vld [vmem:[%s1596 + $0xa0] sm:$0xf]
        %v1638 = vld [vmem:[%s1596 + $0xa4] sm:$0xf]
        %v1639 = vld [vmem:[%s1596 + $0xa8] sm:$0xf]
        %v1640 = vld [vmem:[%s1596 + $0xac] sm:$0xf]
        %v1641 = vld [vmem:[%s1596 + $0xb0] sm:$0xf]
        %v1642 = vld [vmem:[%s1596 + $0xb4] sm:$0xf]
        %v1643 = vld [vmem:[%s1596 + $0xb8] sm:$0xf]
        %v1644 = vld [vmem:[%s1596 + $0xbc] sm:$0xf]
        %v1645 = vld [vmem:[%s1596 + $0xc0] sm:$0xf]
        %v1646 = vld [vmem:[%s1596 + $0xc4] sm:$0xf]
        %v1647 = vld [vmem:[%s1596 + $0xc8] sm:$0xf]
        %v1648 = vld [vmem:[%s1596 + $0xcc] sm:$0xf]
        %v1649 = vld [vmem:[%s1596 + $0xd0] sm:$0xf]
        %v1650 = vld [vmem:[%s1596 + $0xd4] sm:$0xf]
        %v1651 = vld [vmem:[%s1596 + $0xd8] sm:$0xf]
        %v1652 = vld [vmem:[%s1596 + $0xdc] sm:$0xf]
        %v1653 = vld [vmem:[%s1596 + $0xe0] sm:$0xf]
        %v1654 = vld [vmem:[%s1596 + $0xe4] sm:$0xf]
        %v1655 = vld [vmem:[%s1596 + $0xe8] sm:$0xf]
        %v1656 = vld [vmem:[%s1596 + $0xec] sm:$0xf]
        %v1657 = vld [vmem:[%s1596 + $0xf0] sm:$0xf]
        %v1658 = vld [vmem:[%s1596 + $0xf4] sm:$0xf]
        %v1659 = vld [vmem:[%s1596 + $0xf8] sm:$0xf]
        %v1660 = vld [vmem:[%s1596 + $0xfc] sm:$0xf]
        %v1725 = vunpack.c.l.b16 %v1597
        %v1726 = vunpack.c.l.b16 %v1598
        %v1727 = vunpack.c.l.b16 %v1599
        %v1728 = vunpack.c.l.b16 %v1600
        %v1729 = vunpack.c.l.b16 %v1601
        %v1730 = vunpack.c.l.b16 %v1602
        %v1731 = vunpack.c.l.b16 %v1603
        %v1732 = vunpack.c.l.b16 %v1604
        %v1733 = vunpack.c.l.b16 %v1605
        %v1734 = vunpack.c.l.b16 %v1606
        %v1735 = vunpack.c.l.b16 %v1607
        %v1736 = vunpack.c.l.b16 %v1608
        %v1737 = vunpack.c.l.b16 %v1609
        %v1738 = vunpack.c.l.b16 %v1610
        %v1739 = vunpack.c.l.b16 %v1611
        %v1740 = vunpack.c.l.b16 %v1612
        %v1741 = vunpack.c.l.b16 %v1613
        %v1742 = vunpack.c.l.b16 %v1614
        %v1743 = vunpack.c.l.b16 %v1615
        %v1744 = vunpack.c.l.b16 %v1616
        %v1745 = vunpack.c.l.b16 %v1617
        %v1746 = vunpack.c.l.b16 %v1618
        %v1747 = vunpack.c.l.b16 %v1619
        %v1748 = vunpack.c.l.b16 %v1620
        %v1749 = vunpack.c.l.b16 %v1621
        %v1750 = vunpack.c.l.b16 %v1622
        %v1751 = vunpack.c.l.b16 %v1623
        %v1752 = vunpack.c.l.b16 %v1624
        %v1753 = vunpack.c.l.b16 %v1625
        %v1754 = vunpack.c.l.b16 %v1626
        %v1755 = vunpack.c.l.b16 %v1627
        %v1756 = vunpack.c.l.b16 %v1628
        %v1757 = vunpack.c.l.b16 %v1629
        %v1758 = vunpack.c.l.b16 %v1630
        %v1759 = vunpack.c.l.b16 %v1631
        %v1760 = vunpack.c.l.b16 %v1632
        %v1761 = vunpack.c.l.b16 %v1633
        %v1762 = vunpack.c.l.b16 %v1634
        %v1763 = vunpack.c.l.b16 %v1635
        %v1764 = vunpack.c.l.b16 %v1636
        %v1765 = vunpack.c.l.b16 %v1637
        %v1766 = vunpack.c.l.b16 %v1638
        %v1767 = vunpack.c.l.b16 %v1639
        %v1768 = vunpack.c.l.b16 %v1640
        %v1769 = vunpack.c.l.b16 %v1641
        %v1770 = vunpack.c.l.b16 %v1642
        %v1771 = vunpack.c.l.b16 %v1643
        %v1772 = vunpack.c.l.b16 %v1644
        %v1773 = vunpack.c.l.b16 %v1645
        %v1774 = vunpack.c.l.b16 %v1646
        %v1775 = vunpack.c.l.b16 %v1647
        %v1776 = vunpack.c.l.b16 %v1648
        %v1777 = vunpack.c.l.b16 %v1649
        %v1778 = vunpack.c.l.b16 %v1650
        %v1779 = vunpack.c.l.b16 %v1651
        %v1780 = vunpack.c.l.b16 %v1652
        %v1781 = vunpack.c.l.b16 %v1653
        %v1782 = vunpack.c.l.b16 %v1654
        %v1783 = vunpack.c.l.b16 %v1655
        %v1784 = vunpack.c.l.b16 %v1656
        %v1785 = vunpack.c.l.b16 %v1657
        %v1786 = vunpack.c.l.b16 %v1658
        %v1787 = vunpack.c.l.b16 %v1659
        %v1788 = vunpack.c.l.b16 %v1660
        %v1789 = vpack.c.b16 %v1726, %v1725
        %v1790 = vpack.c.b16 %v1728, %v1727
        %v1791 = vpack.c.b16 %v1730, %v1729
        %v1792 = vpack.c.b16 %v1732, %v1731
        %v1793 = vpack.c.b16 %v1734, %v1733
        %v1794 = vpack.c.b16 %v1736, %v1735
        %v1795 = vpack.c.b16 %v1738, %v1737
        %v1796 = vpack.c.b16 %v1740, %v1739
        %v1797 = vpack.c.b16 %v1742, %v1741
        %v1798 = vpack.c.b16 %v1744, %v1743
        %v1799 = vpack.c.b16 %v1746, %v1745
        %v1800 = vpack.c.b16 %v1748, %v1747
        %v1801 = vpack.c.b16 %v1750, %v1749
        %v1802 = vpack.c.b16 %v1752, %v1751
        %v1803 = vpack.c.b16 %v1754, %v1753
        %v1804 = vpack.c.b16 %v1756, %v1755
        %v1805 = vpack.c.b16 %v1758, %v1757
        %v1806 = vpack.c.b16 %v1760, %v1759
        %v1807 = vpack.c.b16 %v1762, %v1761
        %v1808 = vpack.c.b16 %v1764, %v1763
        %v1809 = vpack.c.b16 %v1766, %v1765
        %v1810 = vpack.c.b16 %v1768, %v1767
        %v1811 = vpack.c.b16 %v1770, %v1769
        %v1812 = vpack.c.b16 %v1772, %v1771
        %v1813 = vpack.c.b16 %v1774, %v1773
        %v1814 = vpack.c.b16 %v1776, %v1775
        %v1815 = vpack.c.b16 %v1778, %v1777
        %v1816 = vpack.c.b16 %v1780, %v1779
        %v1817 = vpack.c.b16 %v1782, %v1781
        %v1818 = vpack.c.b16 %v1784, %v1783
        %v1819 = vpack.c.b16 %v1786, %v1785
        %v1820 = vpack.c.b16 %v1788, %v1787
        %1853 = vmatprep.subr.bf16.mxu0 0
        %1854 = vmatpush1.bf16.msra.mxu0 %v1789
        %1855 = vmatprep.subr.bf16.mxu0 0
        %1856 = vmatpush1.bf16.msra.mxu0 %v1790
        %1857 = vmatprep.subr.bf16.mxu0 0
        %1858 = vmatpush1.bf16.msra.mxu0 %v1791
        %1859 = vmatprep.subr.bf16.mxu0 0
        %1860 = vmatpush1.bf16.msra.mxu0 %v1792
        %1861 = vmatprep.subr.bf16.mxu0 0
        %1862 = vmatpush1.bf16.msra.mxu0 %v1793
        %1863 = vmatprep.subr.bf16.mxu0 0
        %1864 = vmatpush1.bf16.msra.mxu0 %v1794
        %1865 = vmatprep.subr.bf16.mxu0 0
        %1866 = vmatpush1.bf16.msra.mxu0 %v1795
        %1867 = vmatprep.subr.bf16.mxu0 0
        %1868 = vmatpush1.bf16.msra.mxu0 %v1796
        %1869 = vmatprep.subr.bf16.mxu0 0
        %1870 = vmatpush1.bf16.msra.mxu0 %v1797
        %1871 = vmatprep.subr.bf16.mxu0 0
        %1872 = vmatpush1.bf16.msra.mxu0 %v1798
        %1873 = vmatprep.subr.bf16.mxu0 0
        %1874 = vmatpush1.bf16.msra.mxu0 %v1799
        %1875 = vmatprep.subr.bf16.mxu0 0
        %1876 = vmatpush1.bf16.msra.mxu0 %v1800
        %1877 = vmatprep.subr.bf16.mxu0 0
        %1878 = vmatpush1.bf16.msra.mxu0 %v1801
        %1879 = vmatprep.subr.bf16.mxu0 0
        %1880 = vmatpush1.bf16.msra.mxu0 %v1802
        %1881 = vmatprep.subr.bf16.mxu0 0
        %1882 = vmatpush1.bf16.msra.mxu0 %v1803
        %1883 = vmatprep.subr.bf16.mxu0 0
        %1884 = vmatpush1.bf16.msra.mxu0 %v1804
        %1885 = vmatprep.mubr.bf16.mxu0 %v1305
        %1886 = vmatmul.mubr.bf16.gmra.mrb[0].mxu0 %v1304
        %v1887 = vpop.f32.mrb[0].mxu0
        %v1888 = vadd.f32 0.0, %v1887
        %v1889 = vpop.f32.mrb[0].mxu0
        %v1890 = vpop.f32.mrb[0].mxu0
        %v1891 = vadd.f32 0.0, %v1890
        %v1892 = vpop.f32.mrb[0].mxu0
        %1893 = vmatprep.mubr.bf16.mxu0 %v1309
        %1894 = vmatmul.mubr.bf16.gmra.mrb[0].mxu0 %v1308
        %v1895 = vpop.f32.mrb[0].mxu0
        %v1896 = vadd.f32 0.0, %v1895
        %v1897 = vpop.f32.mrb[0].mxu0
        %v1898 = vpop.f32.mrb[0].mxu0
        %v1899 = vadd.f32 0.0, %v1898
        %v1900 = vpop.f32.mrb[0].mxu0
        %1901 = vdwg.mxu0
        %1902 = vmatprep.subr.bf16.mxu0 0
        %1903 = vmatpush1.bf16.msra.mxu0 %v1805
        %1904 = vmatprep.subr.bf16.mxu0 0
        %1905 = vmatpush1.bf16.msra.mxu0 %v1806
        %1906 = vmatprep.subr.bf16.mxu0 0
        %1907 = vmatpush1.bf16.msra.mxu0 %v1807
        %1908 = vmatprep.subr.bf16.mxu0 0
        %1909 = vmatpush1.bf16.msra.mxu0 %v1808
        %1910 = vmatprep.subr.bf16.mxu0 0
        %1911 = vmatpush1.bf16.msra.mxu0 %v1809
        %1912 = vmatprep.subr.bf16.mxu0 0
        %1913 = vmatpush1.bf16.msra.mxu0 %v1810
        %1914 = vmatprep.subr.bf16.mxu0 0
        %1915 = vmatpush1.bf16.msra.mxu0 %v1811
        %1916 = vmatprep.subr.bf16.mxu0 0
        %1917 = vmatpush1.bf16.msra.mxu0 %v1812
        %1918 = vmatprep.subr.bf16.mxu0 0
        %1919 = vmatpush1.bf16.msra.mxu0 %v1813
        %1920 = vmatprep.subr.bf16.mxu0 0
        %1921 = vmatpush1.bf16.msra.mxu0 %v1814
        %1922 = vmatprep.subr.bf16.mxu0 0
        %1923 = vmatpush1.bf16.msra.mxu0 %v1815
        %1924 = vmatprep.subr.bf16.mxu0 0
        %1925 = vmatpush1.bf16.msra.mxu0 %v1816
        %1926 = vmatprep.subr.bf16.mxu0 0
        %1927 = vmatpush1.bf16.msra.mxu0 %v1817
        %1928 = vmatprep.subr.bf16.mxu0 0
        %1929 = vmatpush1.bf16.msra.mxu0 %v1818
        %1930 = vmatprep.subr.bf16.mxu0 0
        %1931 = vmatpush1.bf16.msra.mxu0 %v1819
        %1932 = vmatprep.subr.bf16.mxu0 0
        %1933 = vmatpush1.bf16.msra.mxu0 %v1820
        %1934 = vmatprep.mubr.bf16.mxu0 %v1307
        %1935 = vmatmul.mubr.bf16.gmra.mrb[0].mxu0 %v1306
        %v1936 = vpop.f32.mrb[0].mxu0
        %v1937 = vadd.f32 %v1888, %v1936
        %v1938 = vpop.f32.mrb[0].mxu0
        %v1939 = vpop.f32.mrb[0].mxu0
        %v1940 = vadd.f32 %v1891, %v1939
        %v1941 = vpop.f32.mrb[0].mxu0
        %1942 = vmatprep.mubr.bf16.mxu0 %v1311
        %1943 = vmatmul.mubr.bf16.gmra.mrb[0].mxu0 %v1310
        %v1944 = vpop.f32.mrb[0].mxu0
        %v1945 = vadd.f32 %v1896, %v1944
        %v1946 = vpop.f32.mrb[0].mxu0
        %v1947 = vpop.f32.mrb[0].mxu0
        %v1948 = vadd.f32 %v1899, %v1947
        %v1949 = vpop.f32.mrb[0].mxu0
        %1950 = vdwg.mxu0
        %v2015 = vunpack.c.l.b16 %v1524
        %v2016 = vunpack.c.l.b16 %v1525
        %v2017 = vunpack.c.l.b16 %v1526
        %v2018 = vunpack.c.l.b16 %v1527
        %v2019 = vunpack.c.l.b16 %v1528
        %v2020 = vunpack.c.l.b16 %v1529
        %v2021 = vunpack.c.l.b16 %v1530
        %v2022 = vunpack.c.l.b16 %v1531
        %v2023 = vunpack.c.l.b16 %v1532
        %v2024 = vunpack.c.l.b16 %v1533
        %v2025 = vunpack.c.l.b16 %v1534
        %v2026 = vunpack.c.l.b16 %v1535
        %v2027 = vunpack.c.l.b16 %v1536
        %v2028 = vunpack.c.l.b16 %v1537
        %v2029 = vunpack.c.l.b16 %v1538
        %v2030 = vunpack.c.l.b16 %v1539
        %v2031 = vunpack.c.l.b16 %v1540
        %v2032 = vunpack.c.l.b16 %v1541
        %v2033 = vunpack.c.l.b16 %v1542
        %v2034 = vunpack.c.l.b16 %v1543
        %v2035 = vunpack.c.l.b16 %v1544
        %v2036 = vunpack.c.l.b16 %v1545
        %v2037 = vunpack.c.l.b16 %v1546
        %v2038 = vunpack.c.l.b16 %v1547
        %v2039 = vunpack.c.l.b16 %v1548
        %v2040 = vunpack.c.l.b16 %v1549
        %v2041 = vunpack.c.l.b16 %v1550
        %v2042 = vunpack.c.l.b16 %v1551
        %v2043 = vunpack.c.l.b16 %v1552
        %v2044 = vunpack.c.l.b16 %v1553
        %v2045 = vunpack.c.l.b16 %v1554
        %v2046 = vunpack.c.l.b16 %v1555
        %v2047 = vunpack.c.l.b16 %v1556
        %v2048 = vunpack.c.l.b16 %v1557
        %v2049 = vunpack.c.l.b16 %v1558
        %v2050 = vunpack.c.l.b16 %v1559
        %v2051 = vunpack.c.l.b16 %v1560
        %v2052 = vunpack.c.l.b16 %v1561
        %v2053 = vunpack.c.l.b16 %v1562
        %v2054 = vunpack.c.l.b16 %v1563
        %v2055 = vunpack.c.l.b16 %v1564
        %v2056 = vunpack.c.l.b16 %v1565
        %v2057 = vunpack.c.l.b16 %v1566
        %v2058 = vunpack.c.l.b16 %v1567
        %v2059 = vunpack.c.l.b16 %v1568
        %v2060 = vunpack.c.l.b16 %v1569
        %v2061 = vunpack.c.l.b16 %v1570
        %v2062 = vunpack.c.l.b16 %v1571
        %v2063 = vunpack.c.l.b16 %v1572
        %v2064 = vunpack.c.l.b16 %v1573
        %v2065 = vunpack.c.l.b16 %v1574
        %v2066 = vunpack.c.l.b16 %v1575
        %v2067 = vunpack.c.l.b16 %v1576
        %v2068 = vunpack.c.l.b16 %v1577
        %v2069 = vunpack.c.l.b16 %v1578
        %v2070 = vunpack.c.l.b16 %v1579
        %v2071 = vunpack.c.l.b16 %v1580
        %v2072 = vunpack.c.l.b16 %v1581
        %v2073 = vunpack.c.l.b16 %v1582
        %v2074 = vunpack.c.l.b16 %v1583
        %v2075 = vunpack.c.l.b16 %v1584
        %v2076 = vunpack.c.l.b16 %v1585
        %v2077 = vunpack.c.l.b16 %v1586
        %v2078 = vunpack.c.l.b16 %v1587
        %v2079 = vpack.c.b16 %v2016, %v2015
        %v2080 = vpack.c.b16 %v2018, %v2017
        %v2081 = vpack.c.b16 %v2020, %v2019
        %v2082 = vpack.c.b16 %v2022, %v2021
        %v2083 = vpack.c.b16 %v2024, %v2023
        %v2084 = vpack.c.b16 %v2026, %v2025
        %v2085 = vpack.c.b16 %v2028, %v2027
        %v2086 = vpack.c.b16 %v2030, %v2029
        %v2087 = vpack.c.b16 %v2032, %v2031
        %v2088 = vpack.c.b16 %v2034, %v2033
        %v2089 = vpack.c.b16 %v2036, %v2035
        %v2090 = vpack.c.b16 %v2038, %v2037
        %v2091 = vpack.c.b16 %v2040, %v2039
        %v2092 = vpack.c.b16 %v2042, %v2041
        %v2093 = vpack.c.b16 %v2044, %v2043
        %v2094 = vpack.c.b16 %v2046, %v2045
        %v2095 = vpack.c.b16 %v2048, %v2047
        %v2096 = vpack.c.b16 %v2050, %v2049
        %v2097 = vpack.c.b16 %v2052, %v2051
        %v2098 = vpack.c.b16 %v2054, %v2053
        %v2099 = vpack.c.b16 %v2056, %v2055
        %v2100 = vpack.c.b16 %v2058, %v2057
        %v2101 = vpack.c.b16 %v2060, %v2059
        %v2102 = vpack.c.b16 %v2062, %v2061
        %v2103 = vpack.c.b16 %v2064, %v2063
        %v2104 = vpack.c.b16 %v2066, %v2065
        %v2105 = vpack.c.b16 %v2068, %v2067
        %v2106 = vpack.c.b16 %v2070, %v2069
        %v2107 = vpack.c.b16 %v2072, %v2071
        %v2108 = vpack.c.b16 %v2074, %v2073
        %v2109 = vpack.c.b16 %v2076, %v2075
        %v2110 = vpack.c.b16 %v2078, %v2077
        %2143 = vmatprep.subr.bf16.mxu0 0
        %2144 = vmatpush1.bf16.msra.mxu0 %v2079
        %2145 = vmatprep.subr.bf16.mxu0 0
        %2146 = vmatpush1.bf16.msra.mxu0 %v2080
        %2147 = vmatprep.subr.bf16.mxu0 0
        %2148 = vmatpush1.bf16.msra.mxu0 %v2081
        %2149 = vmatprep.subr.bf16.mxu0 0
        %2150 = vmatpush1.bf16.msra.mxu0 %v2082
        %2151 = vmatprep.subr.bf16.mxu0 0
        %2152 = vmatpush1.bf16.msra.mxu0 %v2083
        %2153 = vmatprep.subr.bf16.mxu0 0
        %2154 = vmatpush1.bf16.msra.mxu0 %v2084
        %2155 = vmatprep.subr.bf16.mxu0 0
        %2156 = vmatpush1.bf16.msra.mxu0 %v2085
        %2157 = vmatprep.subr.bf16.mxu0 0
        %2158 = vmatpush1.bf16.msra.mxu0 %v2086
        %2159 = vmatprep.subr.bf16.mxu0 0
        %2160 = vmatpush1.bf16.msra.mxu0 %v2087
        %2161 = vmatprep.subr.bf16.mxu0 0
        %2162 = vmatpush1.bf16.msra.mxu0 %v2088
        %2163 = vmatprep.subr.bf16.mxu0 0
        %2164 = vmatpush1.bf16.msra.mxu0 %v2089
        %2165 = vmatprep.subr.bf16.mxu0 0
        %2166 = vmatpush1.bf16.msra.mxu0 %v2090
        %2167 = vmatprep.subr.bf16.mxu0 0
        %2168 = vmatpush1.bf16.msra.mxu0 %v2091
        %2169 = vmatprep.subr.bf16.mxu0 0
        %2170 = vmatpush1.bf16.msra.mxu0 %v2092
        %2171 = vmatprep.subr.bf16.mxu0 0
        %2172 = vmatpush1.bf16.msra.mxu0 %v2093
        %2173 = vmatprep.subr.bf16.mxu0 0
        %2174 = vmatpush1.bf16.msra.mxu0 %v2094
        %2175 = vmatprep.mubr.bf16.mxu0 %v1589
        %2176 = vmatmul.mubr.bf16.gmra.mrb[0].mxu0 %v1588
        %v2177 = vpop.f32.mrb[0].mxu0
        %v2178 = vadd.f32 %v1937, %v2177
        %v2179 = vpop.f32.mrb[0].mxu0
        %v2180 = vpop.f32.mrb[0].mxu0
        %v2181 = vadd.f32 %v1940, %v2180
        %v2182 = vpop.f32.mrb[0].mxu0
        %2183 = vmatprep.mubr.bf16.mxu0 %v1593
        %2184 = vmatmul.mubr.bf16.gmra.mrb[0].mxu0 %v1592
        %v2185 = vpop.f32.mrb[0].mxu0
        %v2186 = vadd.f32 %v1945, %v2185
        %v2187 = vpop.f32.mrb[0].mxu0
        %v2188 = vpop.f32.mrb[0].mxu0
        %v2189 = vadd.f32 %v1948, %v2188
        %v2190 = vpop.f32.mrb[0].mxu0
        %2191 = vdwg.mxu0
        %2192 = vmatprep.subr.bf16.mxu0 0
        %2193 = vmatpush1.bf16.msra.mxu0 %v2095
        %2194 = vmatprep.subr.bf16.mxu0 0
        %2195 = vmatpush1.bf16.msra.mxu0 %v2096
        %2196 = vmatprep.subr.bf16.mxu0 0
        %2197 = vmatpush1.bf16.msra.mxu0 %v2097
        %2198 = vmatprep.subr.bf16.mxu0 0
        %2199 = vmatpush1.bf16.msra.mxu0 %v2098
        %2200 = vmatprep.subr.bf16.mxu0 0
        %2201 = vmatpush1.bf16.msra.mxu0 %v2099
        %2202 = vmatprep.subr.bf16.mxu0 0
        %2203 = vmatpush1.bf16.msra.mxu0 %v2100
        %2204 = vmatprep.subr.bf16.mxu0 0
        %2205 = vmatpush1.bf16.msra.mxu0 %v2101
        %2206 = vmatprep.subr.bf16.mxu0 0
        %2207 = vmatpush1.bf16.msra.mxu0 %v2102
        %2208 = vmatprep.subr.bf16.mxu0 0
        %2209 = vmatpush1.bf16.msra.mxu0 %v2103
        %2210 = vmatprep.subr.bf16.mxu0 0
        %2211 = vmatpush1.bf16.msra.mxu0 %v2104
        %2212 = vmatprep.subr.bf16.mxu0 0
        %2213 = vmatpush1.bf16.msra.mxu0 %v2105
        %2214 = vmatprep.subr.bf16.mxu0 0
        %2215 = vmatpush1.bf16.msra.mxu0 %v2106
        %2216 = vmatprep.subr.bf16.mxu0 0
        %2217 = vmatpush1.bf16.msra.mxu0 %v2107
        %2218 = vmatprep.subr.bf16.mxu0 0
        %2219 = vmatpush1.bf16.msra.mxu0 %v2108
        %2220 = vmatprep.subr.bf16.mxu0 0
        %2221 = vmatpush1.bf16.msra.mxu0 %v2109
        %2222 = vmatprep.subr.bf16.mxu0 0
        %2223 = vmatpush1.bf16.msra.mxu0 %v2110
        %2224 = vmatprep.mubr.bf16.mxu0 %v1591
        %2225 = vmatmul.mubr.bf16.gmra.mrb[0].mxu0 %v1590
        %v2226 = vpop.f32.mrb[0].mxu0
        %v2227 = vadd.f32 %v2178, %v2226
        %v2228 = vpop.f32.mrb[0].mxu0
        %v2229 = vpop.f32.mrb[0].mxu0
        %v2230 = vadd.f32 %v2181, %v2229
        %v2231 = vpop.f32.mrb[0].mxu0
        %2232 = vmatprep.mubr.bf16.mxu0 %v1595
        %2233 = vmatmul.mubr.bf16.gmra.mrb[0].mxu0 %v1594
        %v2234 = vpop.f32.mrb[0].mxu0
        %v2235 = vadd.f32 %v2186, %v2234
        %v2236 = vpop.f32.mrb[0].mxu0
        %v2237 = vpop.f32.mrb[0].mxu0
        %v2238 = vadd.f32 %v2189, %v2237
        %v2239 = vpop.f32.mrb[0].mxu0
        %2240 = vdwg.mxu0
        %s2241 = scalar_lea.vmem %s4, 512
        %v2242 = vld [vmem:[%s2241] sm:$0xf]
        %v2243 = vld [vmem:[%s2241 + $0x4] sm:$0xf]
        %v2244 = vld [vmem:[%s2241 + $0x8] sm:$0xf]
        %v2245 = vld [vmem:[%s2241 + $0xc] sm:$0xf]
        %v2246 = vld [vmem:[%s2241 + $0x10] sm:$0xf]
        %v2247 = vld [vmem:[%s2241 + $0x14] sm:$0xf]
        %v2248 = vld [vmem:[%s2241 + $0x18] sm:$0xf]
        %v2249 = vld [vmem:[%s2241 + $0x1c] sm:$0xf]
        %v2250 = vld [vmem:[%s2241 + $0x20] sm:$0xf]
        %v2251 = vld [vmem:[%s2241 + $0x24] sm:$0xf]
        %v2252 = vld [vmem:[%s2241 + $0x28] sm:$0xf]
        %v2253 = vld [vmem:[%s2241 + $0x2c] sm:$0xf]
        %v2254 = vld [vmem:[%s2241 + $0x30] sm:$0xf]
        %v2255 = vld [vmem:[%s2241 + $0x34] sm:$0xf]
        %v2256 = vld [vmem:[%s2241 + $0x38] sm:$0xf]
        %v2257 = vld [vmem:[%s2241 + $0x3c] sm:$0xf]
        %v2258 = vld [vmem:[%s2241 + $0x40] sm:$0xf]
        %v2259 = vld [vmem:[%s2241 + $0x44] sm:$0xf]
        %v2260 = vld [vmem:[%s2241 + $0x48] sm:$0xf]
        %v2261 = vld [vmem:[%s2241 + $0x4c] sm:$0xf]
        %v2262 = vld [vmem:[%s2241 + $0x50] sm:$0xf]
        %v2263 = vld [vmem:[%s2241 + $0x54] sm:$0xf]
        %v2264 = vld [vmem:[%s2241 + $0x58] sm:$0xf]
        %v2265 = vld [vmem:[%s2241 + $0x5c] sm:$0xf]
        %v2266 = vld [vmem:[%s2241 + $0x60] sm:$0xf]
        %v2267 = vld [vmem:[%s2241 + $0x64] sm:$0xf]
        %v2268 = vld [vmem:[%s2241 + $0x68] sm:$0xf]
        %v2269 = vld [vmem:[%s2241 + $0x6c] sm:$0xf]
        %v2270 = vld [vmem:[%s2241 + $0x70] sm:$0xf]
        %v2271 = vld [vmem:[%s2241 + $0x74] sm:$0xf]
        %v2272 = vld [vmem:[%s2241 + $0x78] sm:$0xf]
        %v2273 = vld [vmem:[%s2241 + $0x7c] sm:$0xf]
        %v2274 = vld [vmem:[%s2241 + $0x80] sm:$0xf]
        %v2275 = vld [vmem:[%s2241 + $0x84] sm:$0xf]
        %v2276 = vld [vmem:[%s2241 + $0x88] sm:$0xf]
        %v2277 = vld [vmem:[%s2241 + $0x8c] sm:$0xf]
        %v2278 = vld [vmem:[%s2241 + $0x90] sm:$0xf]
        %v2279 = vld [vmem:[%s2241 + $0x94] sm:$0xf]
        %v2280 = vld [vmem:[%s2241 + $0x98] sm:$0xf]
        %v2281 = vld [vmem:[%s2241 + $0x9c] sm:$0xf]
        %v2282 = vld [vmem:[%s2241 + $0xa0] sm:$0xf]
        %v2283 = vld [vmem:[%s2241 + $0xa4] sm:$0xf]
        %v2284 = vld [vmem:[%s2241 + $0xa8] sm:$0xf]
        %v2285 = vld [vmem:[%s2241 + $0xac] sm:$0xf]
        %v2286 = vld [vmem:[%s2241 + $0xb0] sm:$0xf]
        %v2287 = vld [vmem:[%s2241 + $0xb4] sm:$0xf]
        %v2288 = vld [vmem:[%s2241 + $0xb8] sm:$0xf]
        %v2289 = vld [vmem:[%s2241 + $0xbc] sm:$0xf]
        %v2290 = vld [vmem:[%s2241 + $0xc0] sm:$0xf]
        %v2291 = vld [vmem:[%s2241 + $0xc4] sm:$0xf]
        %v2292 = vld [vmem:[%s2241 + $0xc8] sm:$0xf]
        %v2293 = vld [vmem:[%s2241 + $0xcc] sm:$0xf]
        %v2294 = vld [vmem:[%s2241 + $0xd0] sm:$0xf]
        %v2295 = vld [vmem:[%s2241 + $0xd4] sm:$0xf]
        %v2296 = vld [vmem:[%s2241 + $0xd8] sm:$0xf]
        %v2297 = vld [vmem:[%s2241 + $0xdc] sm:$0xf]
        %v2298 = vld [vmem:[%s2241 + $0xe0] sm:$0xf]
        %v2299 = vld [vmem:[%s2241 + $0xe4] sm:$0xf]
        %v2300 = vld [vmem:[%s2241 + $0xe8] sm:$0xf]
        %v2301 = vld [vmem:[%s2241 + $0xec] sm:$0xf]
        %v2302 = vld [vmem:[%s2241 + $0xf0] sm:$0xf]
        %v2303 = vld [vmem:[%s2241 + $0xf4] sm:$0xf]
        %v2304 = vld [vmem:[%s2241 + $0xf8] sm:$0xf]
        %v2305 = vld [vmem:[%s2241 + $0xfc] sm:$0xf]
        %v2306 = vpack.c.bf16 %v1457, %v1453
        %v2307 = vpack.c.bf16 %v1459, %v1455
        %v2308 = vpack.c.bf16 %v1510, %v1506
        %v2309 = vpack.c.bf16 %v1512, %v1508
        %v2310 = vpack.c.bf16 %v1467, %v1463
        %v2311 = vpack.c.bf16 %v1469, %v1465
        %v2312 = vpack.c.bf16 %v1520, %v1516
        %v2313 = vpack.c.bf16 %v1522, %v1518
        %v2378 = vunpack.c.l.b16 %v2242
        %v2379 = vunpack.c.l.b16 %v2243
        %v2380 = vunpack.c.l.b16 %v2244
        %v2381 = vunpack.c.l.b16 %v2245
        %v2382 = vunpack.c.l.b16 %v2246
        %v2383 = vunpack.c.l.b16 %v2247
        %v2384 = vunpack.c.l.b16 %v2248
        %v2385 = vunpack.c.l.b16 %v2249
        %v2386 = vunpack.c.l.b16 %v2250
        %v2387 = vunpack.c.l.b16 %v2251
        %v2388 = vunpack.c.l.b16 %v2252
        %v2389 = vunpack.c.l.b16 %v2253
        %v2390 = vunpack.c.l.b16 %v2254
        %v2391 = vunpack.c.l.b16 %v2255
        %v2392 = vunpack.c.l.b16 %v2256
        %v2393 = vunpack.c.l.b16 %v2257
        %v2394 = vunpack.c.l.b16 %v2258
        %v2395 = vunpack.c.l.b16 %v2259
        %v2396 = vunpack.c.l.b16 %v2260
        %v2397 = vunpack.c.l.b16 %v2261
        %v2398 = vunpack.c.l.b16 %v2262
        %v2399 = vunpack.c.l.b16 %v2263
        %v2400 = vunpack.c.l.b16 %v2264
        %v2401 = vunpack.c.l.b16 %v2265
        %v2402 = vunpack.c.l.b16 %v2266
        %v2403 = vunpack.c.l.b16 %v2267
        %v2404 = vunpack.c.l.b16 %v2268
        %v2405 = vunpack.c.l.b16 %v2269
        %v2406 = vunpack.c.l.b16 %v2270
        %v2407 = vunpack.c.l.b16 %v2271
        %v2408 = vunpack.c.l.b16 %v2272
        %v2409 = vunpack.c.l.b16 %v2273
        %v2410 = vunpack.c.l.b16 %v2274
        %v2411 = vunpack.c.l.b16 %v2275
        %v2412 = vunpack.c.l.b16 %v2276
        %v2413 = vunpack.c.l.b16 %v2277
        %v2414 = vunpack.c.l.b16 %v2278
        %v2415 = vunpack.c.l.b16 %v2279
        %v2416 = vunpack.c.l.b16 %v2280
        %v2417 = vunpack.c.l.b16 %v2281
        %v2418 = vunpack.c.l.b16 %v2282
        %v2419 = vunpack.c.l.b16 %v2283
        %v2420 = vunpack.c.l.b16 %v2284
        %v2421 = vunpack.c.l.b16 %v2285
        %v2422 = vunpack.c.l.b16 %v2286
        %v2423 = vunpack.c.l.b16 %v2287
        %v2424 = vunpack.c.l.b16 %v2288
        %v2425 = vunpack.c.l.b16 %v2289
        %v2426 = vunpack.c.l.b16 %v2290
        %v2427 = vunpack.c.l.b16 %v2291
        %v2428 = vunpack.c.l.b16 %v2292
        %v2429 = vunpack.c.l.b16 %v2293
        %v2430 = vunpack.c.l.b16 %v2294
        %v2431 = vunpack.c.l.b16 %v2295
        %v2432 = vunpack.c.l.b16 %v2296
        %v2433 = vunpack.c.l.b16 %v2297
        %v2434 = vunpack.c.l.b16 %v2298
        %v2435 = vunpack.c.l.b16 %v2299
        %v2436 = vunpack.c.l.b16 %v2300
        %v2437 = vunpack.c.l.b16 %v2301
        %v2438 = vunpack.c.l.b16 %v2302
        %v2439 = vunpack.c.l.b16 %v2303
        %v2440 = vunpack.c.l.b16 %v2304
        %v2441 = vunpack.c.l.b16 %v2305
        %v2442 = vpack.c.b16 %v2379, %v2378
        %v2443 = vpack.c.b16 %v2381, %v2380
        %v2444 = vpack.c.b16 %v2383, %v2382
        %v2445 = vpack.c.b16 %v2385, %v2384
        %v2446 = vpack.c.b16 %v2387, %v2386
        %v2447 = vpack.c.b16 %v2389, %v2388
        %v2448 = vpack.c.b16 %v2391, %v2390
        %v2449 = vpack.c.b16 %v2393, %v2392
        %v2450 = vpack.c.b16 %v2395, %v2394
        %v2451 = vpack.c.b16 %v2397, %v2396
        %v2452 = vpack.c.b16 %v2399, %v2398
        %v2453 = vpack.c.b16 %v2401, %v2400
        %v2454 = vpack.c.b16 %v2403, %v2402
        %v2455 = vpack.c.b16 %v2405, %v2404
        %v2456 = vpack.c.b16 %v2407, %v2406
        %v2457 = vpack.c.b16 %v2409, %v2408
        %v2458 = vpack.c.b16 %v2411, %v2410
        %v2459 = vpack.c.b16 %v2413, %v2412
        %v2460 = vpack.c.b16 %v2415, %v2414
        %v2461 = vpack.c.b16 %v2417, %v2416
        %v2462 = vpack.c.b16 %v2419, %v2418
        %v2463 = vpack.c.b16 %v2421, %v2420
        %v2464 = vpack.c.b16 %v2423, %v2422
        %v2465 = vpack.c.b16 %v2425, %v2424
        %v2466 = vpack.c.b16 %v2427, %v2426
        %v2467 = vpack.c.b16 %v2429, %v2428
        %v2468 = vpack.c.b16 %v2431, %v2430
        %v2469 = vpack.c.b16 %v2433, %v2432
        %v2470 = vpack.c.b16 %v2435, %v2434
        %v2471 = vpack.c.b16 %v2437, %v2436
        %v2472 = vpack.c.b16 %v2439, %v2438
        %v2473 = vpack.c.b16 %v2441, %v2440
        %2506 = vmatprep.subr.bf16.mxu0 0
        %2507 = vmatpush1.bf16.msra.mxu0 %v2442
        %2508 = vmatprep.subr.bf16.mxu0 0
        %2509 = vmatpush1.bf16.msra.mxu0 %v2443
        %2510 = vmatprep.subr.bf16.mxu0 0
        %2511 = vmatpush1.bf16.msra.mxu0 %v2444
        %2512 = vmatprep.subr.bf16.mxu0 0
        %2513 = vmatpush1.bf16.msra.mxu0 %v2445
        %2514 = vmatprep.subr.bf16.mxu0 0
        %2515 = vmatpush1.bf16.msra.mxu0 %v2446
        %2516 = vmatprep.subr.bf16.mxu0 0
        %2517 = vmatpush1.bf16.msra.mxu0 %v2447
        %2518 = vmatprep.subr.bf16.mxu0 0
        %2519 = vmatpush1.bf16.msra.mxu0 %v2448
        %2520 = vmatprep.subr.bf16.mxu0 0
        %2521 = vmatpush1.bf16.msra.mxu0 %v2449
        %2522 = vmatprep.subr.bf16.mxu0 0
        %2523 = vmatpush1.bf16.msra.mxu0 %v2450
        %2524 = vmatprep.subr.bf16.mxu0 0
        %2525 = vmatpush1.bf16.msra.mxu0 %v2451
        %2526 = vmatprep.subr.bf16.mxu0 0
        %2527 = vmatpush1.bf16.msra.mxu0 %v2452
        %2528 = vmatprep.subr.bf16.mxu0 0
        %2529 = vmatpush1.bf16.msra.mxu0 %v2453
        %2530 = vmatprep.subr.bf16.mxu0 0
        %2531 = vmatpush1.bf16.msra.mxu0 %v2454
        %2532 = vmatprep.subr.bf16.mxu0 0
        %2533 = vmatpush1.bf16.msra.mxu0 %v2455
        %2534 = vmatprep.subr.bf16.mxu0 0
        %2535 = vmatpush1.bf16.msra.mxu0 %v2456
        %2536 = vmatprep.subr.bf16.mxu0 0
        %2537 = vmatpush1.bf16.msra.mxu0 %v2457
        %2538 = vmatprep.mubr.bf16.mxu0 %v2307
        %2539 = vmatmul.mubr.bf16.gmra.mrb[0].mxu0 %v2306
        %v2540 = vpop.f32.mrb[0].mxu0
        %v2541 = vadd.f32 0.0, %v2540
        %v2542 = vpop.f32.mrb[0].mxu0
        %v2543 = vpop.f32.mrb[0].mxu0
        %v2544 = vadd.f32 0.0, %v2543
        %v2545 = vpop.f32.mrb[0].mxu0
        %2546 = vmatprep.mubr.bf16.mxu0 %v2311
        %2547 = vmatmul.mubr.bf16.gmra.mrb[0].mxu0 %v2310
        %v2548 = vpop.f32.mrb[0].mxu0
        %v2549 = vadd.f32 0.0, %v2548
        %v2550 = vpop.f32.mrb[0].mxu0
        %v2551 = vpop.f32.mrb[0].mxu0
        %v2552 = vadd.f32 0.0, %v2551
        %v2553 = vpop.f32.mrb[0].mxu0
        %2554 = vdwg.mxu0
        %2555 = vmatprep.subr.bf16.mxu0 0
        %2556 = vmatpush1.bf16.msra.mxu0 %v2458
        %2557 = vmatprep.subr.bf16.mxu0 0
        %2558 = vmatpush1.bf16.msra.mxu0 %v2459
        %2559 = vmatprep.subr.bf16.mxu0 0
        %2560 = vmatpush1.bf16.msra.mxu0 %v2460
        %2561 = vmatprep.subr.bf16.mxu0 0
        %2562 = vmatpush1.bf16.msra.mxu0 %v2461
        %2563 = vmatprep.subr.bf16.mxu0 0
        %2564 = vmatpush1.bf16.msra.mxu0 %v2462
        %2565 = vmatprep.subr.bf16.mxu0 0
        %2566 = vmatpush1.bf16.msra.mxu0 %v2463
        %2567 = vmatprep.subr.bf16.mxu0 0
        %2568 = vmatpush1.bf16.msra.mxu0 %v2464
        %2569 = vmatprep.subr.bf16.mxu0 0
        %2570 = vmatpush1.bf16.msra.mxu0 %v2465
        %2571 = vmatprep.subr.bf16.mxu0 0
        %2572 = vmatpush1.bf16.msra.mxu0 %v2466
        %2573 = vmatprep.subr.bf16.mxu0 0
        %2574 = vmatpush1.bf16.msra.mxu0 %v2467
        %2575 = vmatprep.subr.bf16.mxu0 0
        %2576 = vmatpush1.bf16.msra.mxu0 %v2468
        %2577 = vmatprep.subr.bf16.mxu0 0
        %2578 = vmatpush1.bf16.msra.mxu0 %v2469
        %2579 = vmatprep.subr.bf16.mxu0 0
        %2580 = vmatpush1.bf16.msra.mxu0 %v2470
        %2581 = vmatprep.subr.bf16.mxu0 0
        %2582 = vmatpush1.bf16.msra.mxu0 %v2471
        %2583 = vmatprep.subr.bf16.mxu0 0
        %2584 = vmatpush1.bf16.msra.mxu0 %v2472
        %2585 = vmatprep.subr.bf16.mxu0 0
        %2586 = vmatpush1.bf16.msra.mxu0 %v2473
        %2587 = vmatprep.mubr.bf16.mxu0 %v2309
        %2588 = vmatmul.mubr.bf16.gmra.mrb[0].mxu0 %v2308
        %v2589 = vpop.f32.mrb[0].mxu0
        %v2590 = vadd.f32 %v2541, %v2589
        %v2591 = vpop.f32.mrb[0].mxu0
        %v2592 = vpop.f32.mrb[0].mxu0
        %v2593 = vadd.f32 %v2544, %v2592
        %v2594 = vpop.f32.mrb[0].mxu0
        %2595 = vmatprep.mubr.bf16.mxu0 %v2313
        %2596 = vmatmul.mubr.bf16.gmra.mrb[0].mxu0 %v2312
        %v2597 = vpop.f32.mrb[0].mxu0
        %v2598 = vadd.f32 %v2549, %v2597
        %v2599 = vpop.f32.mrb[0].mxu0
        %v2600 = vpop.f32.mrb[0].mxu0
        %v2601 = vadd.f32 %v2552, %v2600
        %v2602 = vpop.f32.mrb[0].mxu0
        %2603 = vdwg.mxu0
        %v2604 = vadd.f32 %v2227, %v2590
        %v2605 = vadd.f32 %v2230, %v2593
        %v2606 = vadd.f32 %v2235, %v2598
        %v2607 = vadd.f32 %v2238, %v2601
        %v2608 = vadd.f32 %v2604, %v340
        %v2609 = vadd.f32 %v2605, %v340
        %v2610 = vadd.f32 %v2606, %v340
        %v2611 = vadd.f32 %v2607, %v340
        %v2612 = vmax.f32 %v2608, 0.0
        %v2613 = vmax.f32 %v2609, 0.0
        %v2614 = vmax.f32 %v2610, 0.0
        %v2615 = vmax.f32 %v2611, 0.0
        %v2616 = vld [vmem:[%s5] sm:$0xff]
        %v2617 = vld [vmem:[%s5 + $0x8] sm:$0xff]
        %v2618 = vld [vmem:[%s5 + $0x10] sm:$0xff]
        %v2619 = vld [vmem:[%s5 + $0x18] sm:$0xff]
        %v2620 = vld [vmem:[%s5 + $0x20] sm:$0xff]
        %v2621 = vld [vmem:[%s5 + $0x28] sm:$0xff]
        %v2622 = vld [vmem:[%s5 + $0x30] sm:$0xff]
        %v2623 = vld [vmem:[%s5 + $0x38] sm:$0xff]
        %v2624 = vpack.c.bf16 %v2613, %v2612
        %v2625 = vpack.c.bf16 %v2615, %v2614
        %v2627 = vlaneseq
        %v2628 = vshrl.u32 %v2627, 7
        %v2629 = vsub.s32 0, %v2628
        %v2630 = vrot.slane %v342, %v2629
        %v2631 = vlaneseq
        %v2632 = vshrl.u32 %v2631, 7
        %v2633 = vsub.s32 1, %v2632
        %v2634 = vrot.slane %v342, %v2633
        %v2635 = vlaneseq
        %v2636 = vshrl.u32 %v2635, 7
        %v2637 = vsub.s32 2, %v2636
        %v2638 = vrot.slane %v342, %v2637
        %v2639 = vlaneseq
        %v2640 = vshrl.u32 %v2639, 7
        %v2641 = vsub.s32 3, %v2640
        %v2642 = vrot.slane %v342, %v2641
        %v2655 = vunpack.c.l.b16 %v2616
        %v2656 = vunpack.c.h.b16 %v2616
        %v2657 = vunpack.c.l.b16 %v2617
        %v2658 = vunpack.c.h.b16 %v2617
        %v2659 = vunpack.c.l.b16 %v2618
        %v2660 = vunpack.c.h.b16 %v2618
        %v2661 = vunpack.c.l.b16 %v2619
        %v2662 = vunpack.c.h.b16 %v2619
        %v2663 = vunpack.c.l.b16 %v2620
        %v2664 = vunpack.c.h.b16 %v2620
        %v2665 = vunpack.c.l.b16 %v2621
        %v2666 = vunpack.c.h.b16 %v2621
        %v2667 = vunpack.c.l.b16 %v2622
        %v2668 = vunpack.c.h.b16 %v2622
        %v2669 = vunpack.c.l.b16 %v2623
        %v2670 = vunpack.c.h.b16 %v2623
        %v2671 = vpack.c.b16 %v2659, %v2655
        %v2672 = vpack.c.b16 %v2660, %v2656
        %v2673 = vpack.c.b16 %v2661, %v2657
        %v2674 = vpack.c.b16 %v2662, %v2658
        %v2675 = vpack.c.b16 %v2667, %v2663
        %v2676 = vpack.c.b16 %v2668, %v2664
        %v2677 = vpack.c.b16 %v2669, %v2665
        %v2678 = vpack.c.b16 %v2670, %v2666
        %v2688 = vsel %vm721, %v2624, 0
        %v2691 = vsel %vm721, %v2625, 0
        %2693 = vmatprep.subr.bf16.mxu0 %v2672
        %2694 = vmatpush1.bf16.msra.mxu0 %v2671
        %2695 = vmatprep.subr.bf16.mxu0 %v2676
        %2696 = vmatpush1.bf16.msra.mxu0 %v2675
        %2697 = vmatprep.subr.bf16.mxu0 0
        %2698 = vmatpush1.bf16.msra.mxu0 0
        %2699 = vmatprep.subr.bf16.mxu0 0
        %2700 = vmatpush1.bf16.msra.mxu0 0
        %2701 = vmatprep.subr.bf16.mxu0 0
        %2702 = vmatpush1.bf16.msra.mxu0 0
        %2703 = vmatprep.subr.bf16.mxu0 0
        %2704 = vmatpush1.bf16.msra.mxu0 0
        %2705 = vmatprep.subr.bf16.mxu0 0
        %2706 = vmatpush1.bf16.msra.mxu0 0
        %2707 = vmatprep.subr.bf16.mxu0 0
        %2708 = vmatpush1.bf16.msra.mxu0 0
        %2709 = vmatprep.subr.bf16.mxu0 0
        %2710 = vmatpush1.bf16.msra.mxu0 0
        %2711 = vmatprep.subr.bf16.mxu0 0
        %2712 = vmatpush1.bf16.msra.mxu0 0
        %2713 = vmatprep.subr.bf16.mxu0 0
        %2714 = vmatpush1.bf16.msra.mxu0 0
        %2715 = vmatprep.subr.bf16.mxu0 0
        %2716 = vmatpush1.bf16.msra.mxu0 0
        %2717 = vmatprep.subr.bf16.mxu0 0
        %2718 = vmatpush1.bf16.msra.mxu0 0
        %2719 = vmatprep.subr.bf16.mxu0 0
        %2720 = vmatpush1.bf16.msra.mxu0 0
        %2721 = vmatprep.subr.bf16.mxu0 0
        %2722 = vmatpush1.bf16.msra.mxu0 0
        %2723 = vmatprep.subr.bf16.mxu0 0
        %2724 = vmatpush1.bf16.msra.mxu0 0
        %2725 = vmatprep.mubr.bf16.mxu0 0
        %2726 = vmatmul.mubr.bf16.gmra.mrb[0].mxu0 %v2688
        %v2727 = vpop.f32.mrb[0].mxu0
        %v2728 = vadd.f32 %v2630, %v2727
        %v2729 = vpop.f32.mrb[0].mxu0
        %v2730 = vadd.f32 %v2634, %v2729
        %v2731 = vpop.f32.mrb[0].mxu0
        %v2732 = vadd.f32 %v2630, %v2731
        %v2733 = vpop.f32.mrb[0].mxu0
        %v2734 = vadd.f32 %v2634, %v2733
        %2735 = vmatprep.mubr.bf16.mxu0 0
        %2736 = vmatmul.mubr.bf16.gmra.mrb[0].mxu0 %v2691
        %v2737 = vpop.f32.mrb[0].mxu0
        %v2738 = vadd.f32 %v2630, %v2737
        %v2739 = vpop.f32.mrb[0].mxu0
        %v2740 = vadd.f32 %v2634, %v2739
        %v2741 = vpop.f32.mrb[0].mxu0
        %v2742 = vadd.f32 %v2630, %v2741
        %v2743 = vpop.f32.mrb[0].mxu0
        %v2744 = vadd.f32 %v2634, %v2743
        %2745 = vdwg.mxu0
        %2746 = vmatprep.subr.bf16.mxu0 %v2674
        %2747 = vmatpush1.bf16.msra.mxu0 %v2673
        %2748 = vmatprep.subr.bf16.mxu0 %v2678
        %2749 = vmatpush1.bf16.msra.mxu0 %v2677
        %2750 = vmatprep.subr.bf16.mxu0 0
        %2751 = vmatpush1.bf16.msra.mxu0 0
        %2752 = vmatprep.subr.bf16.mxu0 0
        %2753 = vmatpush1.bf16.msra.mxu0 0
        %2754 = vmatprep.subr.bf16.mxu0 0
        %2755 = vmatpush1.bf16.msra.mxu0 0
        %2756 = vmatprep.subr.bf16.mxu0 0
        %2757 = vmatpush1.bf16.msra.mxu0 0
        %2758 = vmatprep.subr.bf16.mxu0 0
        %2759 = vmatpush1.bf16.msra.mxu0 0
        %2760 = vmatprep.subr.bf16.mxu0 0
        %2761 = vmatpush1.bf16.msra.mxu0 0
        %2762 = vmatprep.subr.bf16.mxu0 0
        %2763 = vmatpush1.bf16.msra.mxu0 0
        %2764 = vmatprep.subr.bf16.mxu0 0
        %2765 = vmatpush1.bf16.msra.mxu0 0
        %2766 = vmatprep.subr.bf16.mxu0 0
        %2767 = vmatpush1.bf16.msra.mxu0 0
        %2768 = vmatprep.subr.bf16.mxu0 0
        %2769 = vmatpush1.bf16.msra.mxu0 0
        %2770 = vmatprep.subr.bf16.mxu0 0
        %2771 = vmatpush1.bf16.msra.mxu0 0
        %2772 = vmatprep.subr.bf16.mxu0 0
        %2773 = vmatpush1.bf16.msra.mxu0 0
        %2774 = vmatprep.subr.bf16.mxu0 0
        %2775 = vmatpush1.bf16.msra.mxu0 0
        %2776 = vmatprep.subr.bf16.mxu0 0
        %2777 = vmatpush1.bf16.msra.mxu0 0
        %2778 = vmatprep.mubr.bf16.mxu0 0
        %2779 = vmatmul.mubr.bf16.gmra.mrb[0].mxu0 %v2688
        %v2780 = vpop.f32.mrb[0].mxu0
        %v2781 = vadd.f32 %v2638, %v2780
        %v2782 = vpop.f32.mrb[0].mxu0
        %v2783 = vadd.f32 %v2642, %v2782
        %v2784 = vpop.f32.mrb[0].mxu0
        %v2785 = vadd.f32 %v2638, %v2784
        %v2786 = vpop.f32.mrb[0].mxu0
        %v2787 = vadd.f32 %v2642, %v2786
        %2788 = vmatprep.mubr.bf16.mxu0 0
        %2789 = vmatmul.mubr.bf16.gmra.mrb[0].mxu0 %v2691
        %v2790 = vpop.f32.mrb[0].mxu0
        %v2791 = vadd.f32 %v2638, %v2790
        %v2792 = vpop.f32.mrb[0].mxu0
        %v2793 = vadd.f32 %v2642, %v2792
        %v2794 = vpop.f32.mrb[0].mxu0
        %v2795 = vadd.f32 %v2638, %v2794
        %v2796 = vpop.f32.mrb[0].mxu0
        %v2797 = vadd.f32 %v2642, %v2796
        %2798 = vdwg.mxu0
        %v2799 = vmax.f32 %v2728, 0.0
        %v2800 = vmax.f32 %v2730, 0.0
        %v2801 = vmax.f32 %v2781, 0.0
        %v2802 = vmax.f32 %v2783, 0.0
        %v2803 = vmax.f32 %v2732, 0.0
        %v2804 = vmax.f32 %v2734, 0.0
        %v2805 = vmax.f32 %v2785, 0.0
        %v2806 = vmax.f32 %v2787, 0.0
        %v2807 = vmax.f32 %v2738, 0.0
        %v2808 = vmax.f32 %v2740, 0.0
        %v2809 = vmax.f32 %v2791, 0.0
        %v2810 = vmax.f32 %v2793, 0.0
        %v2811 = vmax.f32 %v2742, 0.0
        %v2812 = vmax.f32 %v2744, 0.0
        %v2813 = vmax.f32 %v2795, 0.0
        %v2814 = vmax.f32 %v2797, 0.0
        %2815 = vst [vmem:[%s301] sm:$0xff] %v2799
        %2816 = vst [vmem:[%s301 + $0x8] sm:$0xff] %v2800
        %2817 = vst [vmem:[%s301 + $0x10] sm:$0xff] %v2801
        %2818 = vst [vmem:[%s301 + $0x18] sm:$0xff] %v2802
        %2819 = vst [vmem:[%s301 + $0x20] sm:$0xff] %v2803
        %2820 = vst [vmem:[%s301 + $0x28] sm:$0xff] %v2804
        %2821 = vst [vmem:[%s301 + $0x30] sm:$0xff] %v2805
        %2822 = vst [vmem:[%s301 + $0x38] sm:$0xff] %v2806
        %2823 = vst [vmem:[%s301 + $0x40] sm:$0xff] %v2807
        %2824 = vst [vmem:[%s301 + $0x48] sm:$0xff] %v2808
        %2825 = vst [vmem:[%s301 + $0x50] sm:$0xff] %v2809
        %2826 = vst [vmem:[%s301 + $0x58] sm:$0xff] %v2810
        %2827 = vst [vmem:[%s301 + $0x60] sm:$0xff] %v2811
        %2828 = vst [vmem:[%s301 + $0x68] sm:$0xff] %v2812
        %2829 = vst [vmem:[%s301 + $0x70] sm:$0xff] %v2813
        %2830 = vst [vmem:[%s301 + $0x78] sm:$0xff] %v2814
        %s2831 = sand.u32 %s203, 1
        %s2832 = scalar_lea.sflag [#allocation3], %s2831
        %s2833 = sand.u32 %s203, 1
        %s2834 = smul.addr %s2833, 128
        %s2835 = scalar_lea.vmem [#allocation2], %s2834
        // Predicated region
        $region53: #{tpu_custom_call.1} parent=51 // pred_check
          %p2836 = pneg %p213
        $region54: #{tpu_custom_call.1} parent=51 // pred_check_branch
          %2838 = sbr.rel (%p2836) target = $region56
        $region55: #{tpu_custom_call.1} parent=51 // pred_region
          %s2839 = smul.u32 4, %s22
          %s2841 = ssub.s32 2048, 2048
          %2842 = vsyncadd %s2832, %s2841
          %s2843 = smul.addr %s2839, 4
          %s2844 = smul.addr %s2843, 128
          %s2845 = scalar_lea.hbm %s8, %s2844
          %s2846 = sshll.u32 %s2835, 4
          %s2847 = int_to_ptr.vmem [resolvable:$true] %s2846
          %2852 = dma.vmem_to_hbm [thread:$0]  %s2847, 2048, %s2845, %s2832, 512, 512, 32
        $region56: #{tpu_custom_call.1} parent=51 // pred_fallthru
          _
      $region52: #{tpu_custom_call.1} parent=5 // pred_fallthru
        _
      %p2853 = scmp.le.s32.totalorder 2, %s17
      // Predicated region
      $region57: #{tpu_custom_call.1} parent=5 // pred_check
        %p2854 = pneg %p2853
      $region58: #{tpu_custom_call.1} parent=5 // pred_check_branch
        %2856 = sbr.rel (%p2854) target = $region60
      $region59: #{tpu_custom_call.1} parent=5 // pred_region
        %s2857 = ssub.s32 %s17, 2
        // Predicated region
        $region61: #{tpu_custom_call.1} parent=59 // pred_check
          %p2858 = pneg %p219
        $region62: #{tpu_custom_call.1} parent=59 // pred_check_branch
          %2860 = sbr.rel (%p2858) target = $region64
        $region63: #{tpu_custom_call.1} parent=59 // pred_region
          %s2861 = sand.u32 %s204, 1
          %s2862 = scalar_lea.sflag [#allocation3], %s2861
          %s2863 = sand.u32 %s204, 1
          %s2864 = smul.addr %s2863, 128
          %s2865 = scalar_lea.vmem [#allocation2], %s2864
          %2866 = dma.done %s2862, 2048
        $region64: #{tpu_custom_call.1} parent=59 // pred_fallthru
          _
      $region60: #{tpu_custom_call.1} parent=5 // pred_fallthru
        _
    $region6: #{tpu_custom_call.1} parent=1 // loop_footer
      %s21 = sadd.s32 1, %s17
    $region7: #{tpu_custom_call.1} parent=1 // loop_footer_branch
      %16 = sbr.rel target = $region3
    $region8: #{tpu_custom_call.1} parent=1 // loop_exit
      _
    %2867 = vsyncpa [#allocation3], 1
    %s2868 = scalar_lea.sflag [#allocation3], 1
    %2869 = vsyncpa %s2868, 1

</llo_original>
